<compile_context>
chip_gen: v6e
topology: v6e:2x2x1
jax: 0.10.0
libtpu: 0.0.40
codegen_flags: <defaults>
</compile_context>

<pallas_src>
import jax
import jax.numpy as jnp
from jax.experimental import pallas as pl
from jax.experimental.pallas import tpu as pltpu


# --------------------------------------------------------------------------
# Fused kernel: one batch element per grid step.
#
# Layouts (all lane-dense):
#   x   quad-row packed  (H/4 + 2, 4*Cin*W)   rows 0 and H/4+1 are zero pads
#   h   quad-row packed  scratch (H/4 + 2, 4*C1*W), rows 0,1 are zero pads
#   out pair-row packed  (Ho/2, 2*C2*Wo)
# --------------------------------------------------------------------------
def _down_connection_kernel(xq_ref, a1_ref, bias1_ref, c2_ref, cd_ref,
                            bias2_ref, o_ref, hq_ref):
    nq = o_ref.shape[1]            # quad rows == output pair rows (H/4 == Ho/2)
    wh = hq_ref.shape[1]           # 4 * C1 * W
    wo = o_ref.shape[2]            # 2 * C2 * Wo

    # ---- convbn1 + ReLU (stride 1), quad-row form --------------------------
    # h quad p needs x quads p-1, p, p+1  ->  taps d = 0,1,2 over padded rows.
    acc1 = jnp.broadcast_to(bias1_ref[...], (nq, wh)).astype(jnp.float32)
    for d in range(3):
        acc1 = acc1 + jnp.dot(xq_ref[0, pl.ds(d, nq), :], a1_ref[d],
                              preferred_element_type=jnp.float32)
    hq_ref[pl.ds(0, 2), :] = jnp.zeros((2, wh), hq_ref.dtype)    # "quad -1" pad
    hq_ref[pl.ds(2, nq), :] = jnp.maximum(acc1, 0.0).astype(hq_ref.dtype)

    # ---- convbn2(h) + downsample(x) + residual add + ReLU ------------------
    # output pair q needs source quads q-1, q  ->  taps d = 0,1.
    acc = jnp.broadcast_to(bias2_ref[...], (nq, wo)).astype(jnp.float32)
    for d in range(2):
        acc = acc + jnp.dot(hq_ref[pl.ds(d + 1, nq), :], c2_ref[d],
                            preferred_element_type=jnp.float32)
        acc = acc + jnp.dot(xq_ref[0, pl.ds(d, nq), :], cd_ref[d],
                            preferred_element_type=jnp.float32)
    o_ref[0] = jnp.maximum(acc, 0.0).astype(o_ref.dtype)


# --------------------------------------------------------------------------
# Trace-time construction of the folded conv+BN matrices (tiny tensors).
# --------------------------------------------------------------------------
def _col_mats(w_oihw, bn_scale, w_in, w_out, stride):
    """B_kh[ci*Win + w, co*Wout + ow] = scale[co] * w[co, ci, kh, w - stride*ow + 1]."""
    w_f = w_oihw.astype(jnp.float32) * bn_scale.astype(jnp.float32)[:, None, None, None]
    cout, cin = w_f.shape[0], w_f.shape[1]
    w_idx = jnp.arange(w_in)[:, None]
    ow = jnp.arange(w_out)[None, :]
    kw = w_idx - stride * ow + 1                                  # (Win, Wout)
    valid = (kw >= 0) & (kw <= 2)
    kw_c = jnp.clip(kw, 0, 2)
    mats = []
    for kh in range(3):
        g = w_f[:, :, kh, :][:, :, kw_c]                          # (Cout, Cin, Win, Wout)
        g = jnp.where(valid[None, None], g, 0.0)
        mats.append(jnp.transpose(g, (1, 2, 0, 3)).reshape(cin * w_in, cout * w_out))
    return jnp.stack(mats)                                        # (3, Cin*Win, Cout*Wout)


def _block_mats(bk, r_in, r_out, stride, deltas):
    """Row-group ("space-to-depth") conv matrices from per-kh column matrices.

    Block [i, j] of mats[d] equals bk[kh] iff source row i of group (P + deltas[d])
    feeds output row j of group P with vertical tap kh:
        stride*j + kh - 1 == r_in*deltas[d] + i       (requires stride*r_out == r_in)
    """
    kin, kout = int(bk.shape[1]), int(bk.shape[2])
    mats = []
    for delta in deltas:
        m = jnp.zeros((r_in * kin, r_out * kout), bk.dtype)
        for j in range(r_out):
            for kh in range(3):
                i = stride * j + kh - 1 - r_in * delta
                if 0 <= i < r_in:
                    m = m.at[i * kin:(i + 1) * kin, j * kout:(j + 1) * kout].set(bk[kh])
        mats.append(m)
    return jnp.stack(mats)


def _bias_row(bn_shift, w_out):
    cout = bn_shift.shape[0]
    return jnp.broadcast_to(bn_shift.astype(jnp.float32)[:, None],
                            (cout, w_out)).reshape(1, cout * w_out)


# --------------------------------------------------------------------------
# Wrapper: DownConnection.forward = relu(convbn2(relu(convbn1(x))) + downsample(x))
# --------------------------------------------------------------------------
def down_connection_pallas(x_nchw, params):
    B, Cin, H, W = x_nchw.shape
    C1 = params["w1"].shape[0]          # planes
    C2 = params["w2"].shape[0]          # planes
    s = 2
    Ho = (H - 1) // s + 1
    Wo = (W - 1) // s + 1
    # TODO(synk): generalize to H not divisible by 4 (pad or fall back to pairs).
    assert H % 4 == 0

    Kx, K1, N2 = Cin * W, C1 * W, C2 * Wo
    Hq, Hop = H // 4, Ho // 2           # Hq == Hop since Ho = H/2
    cdt = jnp.bfloat16

    # folded conv+BN matrices in row-group ("space-to-depth") form, bf16
    b1k = _col_mats(params["w1"], params["s1"], W, W, 1)
    b2k = _col_mats(params["w2"], params["s2"], W, Wo, s)
    bdk = _col_mats(params["wd"], params["sd"], W, Wo, s)
    a1 = _block_mats(b1k, 4, 4, 1, (-1, 0, 1)).astype(cdt)        # (3, 4*Kx, 4*K1)
    c2 = _block_mats(b2k, 4, 2, s, (-1, 0)).astype(cdt)           # (2, 4*K1, 2*N2)
    cd = _block_mats(bdk, 4, 2, s, (-1, 0)).astype(cdt)           # (2, 4*Kx, 2*N2)
    bias1 = jnp.tile(_bias_row(params["sh1"], W), (1, 4))                         # (1, 4*K1)
    bias2 = jnp.tile(_bias_row(params["sh2"], Wo) + _bias_row(params["shd"], Wo),
                     (1, 2))                                                       # (1, 2*N2)

    # pack x: NCHW -> (B, H/4, 4*Cin*W), one zero quad-row pad top & bottom
    xq = jnp.transpose(x_nchw.astype(cdt), (0, 2, 1, 3)).reshape(B, Hq, 4 * Kx)
    xq = jnp.pad(xq, ((0, 0), (1, 1), (0, 0)))                    # (B, Hq+2, 4*Kx)

    out = pl.pallas_call(
        _down_connection_kernel,
        out_shape=jax.ShapeDtypeStruct((B, Hop, 2 * N2), jnp.float32),
        grid=(B,),
        in_specs=[
            pl.BlockSpec((1, Hq + 2, 4 * Kx), lambda b: (b, 0, 0)),   # x (quad rows)
            pl.BlockSpec((3, 4 * Kx, 4 * K1), lambda b: (0, 0, 0)),   # conv1 taps
            pl.BlockSpec((1, 4 * K1), lambda b: (0, 0)),              # bias1
            pl.BlockSpec((2, 4 * K1, 2 * N2), lambda b: (0, 0, 0)),   # conv2 taps
            pl.BlockSpec((2, 4 * Kx, 2 * N2), lambda b: (0, 0, 0)),   # downsample taps
            pl.BlockSpec((1, 2 * N2), lambda b: (0, 0)),              # bias2 + biasd
        ],
        out_specs=pl.BlockSpec((1, Hop, 2 * N2), lambda b: (b, 0, 0)),
        scratch_shapes=[pltpu.VMEM((Hq + 2, 4 * K1), cdt)],           # h (quad rows)
        compiler_params=pltpu.CompilerParams(
            dimension_semantics=("parallel",)),
    )(xq, a1, bias1, c2, cd, bias2)

    # (B, Ho/2, 2*C2*Wo) -> NCHW
    y = out.reshape(B, Hop, 2, C2, Wo)
    return jnp.transpose(y, (0, 3, 1, 2, 4)).reshape(B, C2, Ho, Wo)


down_connection = jax.jit(down_connection_pallas)


# --------------------------------------------------------------------------
# Deterministic synthetic parameters (PyTorch OIHW conv weights + folded BN).
# --------------------------------------------------------------------------
def make_params(key, inplanes, planes):
    ks = jax.random.split(key, 3)

    def conv_w(k, cin, cout):
        return 0.1 * jax.random.normal(k, (cout, cin, 3, 3), jnp.float32)

    def bn(cout, g0, b0, m0, v0):
        idx = jnp.arange(cout, dtype=jnp.float32)
        gamma = 1.0 + g0 * idx / cout
        beta = b0 * idx / cout
        mean = m0 * (idx - cout / 2.0) / cout
        var = 1.0 + v0 * idx / cout
        scale = gamma / jnp.sqrt(var + 1e-5)
        shift = beta - mean * scale
        return scale, shift

    p = {}
    p["w1"] = conv_w(ks[0], inplanes, planes)
    p["s1"], p["sh1"] = bn(planes, 0.3, 0.1, 0.2, 0.5)
    p["w2"] = conv_w(ks[1], planes, planes)
    p["s2"], p["sh2"] = bn(planes, -0.2, 0.05, -0.1, 0.25)
    p["wd"] = conv_w(ks[2], inplanes, planes)
    p["sd"], p["shd"] = bn(planes, 0.15, -0.1, 0.3, 0.4)
    return p


# ---------------- pure-JAX f32 reference (correctness check) ----------------
def _ref_conv_bn(x, w, scale, shift, stride):
    y = jax.lax.conv_general_dilated(
        x, w, window_strides=(stride, stride), padding=((1, 1), (1, 1)),
        dimension_numbers=("NCHW", "OIHW", "NCHW"))
    return y * scale.reshape(1, -1, 1, 1) + shift.reshape(1, -1, 1, 1)


def ref_down_connection(x, p):
    h = jax.nn.relu(_ref_conv_bn(x, p["w1"], p["s1"], p["sh1"], 1))
    down = _ref_conv_bn(x, p["wd"], p["sd"], p["shd"], 2)
    return jax.nn.relu(_ref_conv_bn(h, p["w2"], p["s2"], p["sh2"], 2) + down)


if __name__ == "__main__":
    key = jax.random.PRNGKey(0)
    kx, kp = jax.random.split(key)

    B, Cin, H, W = 2, 4, 16, 16        # inplanes = 4
    planes = 8                          # planes = 8, stride = 2

    x = jax.random.normal(kx, (B, Cin, H, W), jnp.float32)
    params = make_params(kp, Cin, planes)

    y = jax.block_until_ready(down_connection(x, params))
    assert y.shape == (B, planes, H // 2, W // 2), y.shape

    # Tolerance reflects bf16 operand rounding through two stacked 3x3 convs
    # (accumulation stays f32); a layout/tap bug would produce O(1) errors.
    y_ref = ref_down_connection(x, params)
    max_err = float(jnp.max(jnp.abs(y - y_ref)))
    assert jnp.allclose(y, y_ref, rtol=5e-2, atol=1e-1), max_err

    print("KERNEL_OK")
</pallas_src>

<mosaic_0001>
module attributes {stable_mosaic.version = 11 : i64} {
  func.func @_down_connection_kernel(%arg0: i32, %arg1: memref<1x6x256xbf16, #tpu.memory_space<vmem>>, %arg2: memref<3x256x512xbf16, #tpu.memory_space<vmem>>, %arg3: memref<1x512xf32, #tpu.memory_space<vmem>>, %arg4: memref<2x512x128xbf16, #tpu.memory_space<vmem>>, %arg5: memref<2x256x128xbf16, #tpu.memory_space<vmem>>, %arg6: memref<1x128xf32, #tpu.memory_space<vmem>>, %arg7: memref<1x4x128xf32, #tpu.memory_space<vmem>>, %arg8: memref<6x512xbf16, #tpu.memory_space<vmem>>) attributes {dimension_semantics = [#tpu.dimension_semantics<parallel>], iteration_bounds = array<i64: 2>, scalar_prefetch = 0 : i64, scratch_operands = 1 : i64, tpu.core_type = #tpu.core_type<tc>, window_params = [{transform_indices = @transform_0, window_bounds = array<i64: 1, 6, 256>}, {pipeline_mode = #tpu.pipeline_mode<synchronous>, transform_indices = @transform_1, window_bounds = array<i64: 3, 256, 512>}, {pipeline_mode = #tpu.pipeline_mode<synchronous>, transform_indices = @transform_2, window_bounds = array<i64: 1, 512>}, {pipeline_mode = #tpu.pipeline_mode<synchronous>, transform_indices = @transform_3, window_bounds = array<i64: 2, 512, 128>}, {pipeline_mode = #tpu.pipeline_mode<synchronous>, transform_indices = @transform_4, window_bounds = array<i64: 2, 256, 128>}, {pipeline_mode = #tpu.pipeline_mode<synchronous>, transform_indices = @transform_5, window_bounds = array<i64: 1, 128>}, {transform_indices = @transform_6, window_bounds = array<i64: 1, 4, 128>}]} {
    %c0 = arith.constant 0 : index
    %c0_0 = arith.constant 0 : index
    %0 = vector.load %arg3[%c0, %c0_0] : memref<1x512xf32, #tpu.memory_space<vmem>>, vector<1x512xf32>
    %1 = vector.shape_cast %0 : vector<1x512xf32> to vector<1x512xf32>
    %2 = vector.broadcast %1 : vector<1x512xf32> to vector<4x512xf32>
    %c0_1 = arith.constant 0 : index
    %c0_2 = arith.constant 0 : index
    %c0_3 = arith.constant 0 : index
    %3 = vector.load %arg1[%c0_1, %c0_2, %c0_3] : memref<1x6x256xbf16, #tpu.memory_space<vmem>>, vector<1x4x256xbf16>
    %4 = vector.shape_cast %3 : vector<1x4x256xbf16> to vector<4x256xbf16>
    %c0_4 = arith.constant 0 : index
    %c0_5 = arith.constant 0 : index
    %c0_6 = arith.constant 0 : index
    %5 = vector.load %arg2[%c0_4, %c0_5, %c0_6] : memref<3x256x512xbf16, #tpu.memory_space<vmem>>, vector<1x256x512xbf16>
    %6 = vector.shape_cast %5 : vector<1x256x512xbf16> to vector<256x512xbf16>
    %cst = arith.constant dense<0.000000e+00> : vector<4x512xf32>
    %7 = tpu.matmul %4, %6, %cst {dimension_numbers = #tpu.dot_dimension_numbers<[1], [0], [0], [1], [0, 0, 1, 1], [], []>} : vector<4x256xbf16>, vector<256x512xbf16>, vector<4x512xf32> -> vector<4x512xf32>
    %8 = arith.addf %2, %7 : vector<4x512xf32>
    %c0_7 = arith.constant 0 : index
    %c1 = arith.constant 1 : index
    %c0_8 = arith.constant 0 : index
    %9 = vector.load %arg1[%c0_7, %c1, %c0_8] : memref<1x6x256xbf16, #tpu.memory_space<vmem>>, vector<1x4x256xbf16>
    %10 = vector.shape_cast %9 : vector<1x4x256xbf16> to vector<4x256xbf16>
    %c1_9 = arith.constant 1 : index
    %c0_10 = arith.constant 0 : index
    %c0_11 = arith.constant 0 : index
    %11 = vector.load %arg2[%c1_9, %c0_10, %c0_11] : memref<3x256x512xbf16, #tpu.memory_space<vmem>>, vector<1x256x512xbf16>
    %12 = vector.shape_cast %11 : vector<1x256x512xbf16> to vector<256x512xbf16>
    %cst_12 = arith.constant dense<0.000000e+00> : vector<4x512xf32>
    %13 = tpu.matmul %10, %12, %cst_12 {dimension_numbers = #tpu.dot_dimension_numbers<[1], [0], [0], [1], [0, 0, 1, 1], [], []>} : vector<4x256xbf16>, vector<256x512xbf16>, vector<4x512xf32> -> vector<4x512xf32>
    %14 = arith.addf %8, %13 : vector<4x512xf32>
    %c0_13 = arith.constant 0 : index
    %c2 = arith.constant 2 : index
    %c0_14 = arith.constant 0 : index
    %15 = vector.load %arg1[%c0_13, %c2, %c0_14] : memref<1x6x256xbf16, #tpu.memory_space<vmem>>, vector<1x4x256xbf16>
    %16 = vector.shape_cast %15 : vector<1x4x256xbf16> to vector<4x256xbf16>
    %c2_15 = arith.constant 2 : index
    %c0_16 = arith.constant 0 : index
    %c0_17 = arith.constant 0 : index
    %17 = vector.load %arg2[%c2_15, %c0_16, %c0_17] : memref<3x256x512xbf16, #tpu.memory_space<vmem>>, vector<1x256x512xbf16>
    %18 = vector.shape_cast %17 : vector<1x256x512xbf16> to vector<256x512xbf16>
    %cst_18 = arith.constant dense<0.000000e+00> : vector<4x512xf32>
    %19 = tpu.matmul %16, %18, %cst_18 {dimension_numbers = #tpu.dot_dimension_numbers<[1], [0], [0], [1], [0, 0, 1, 1], [], []>} : vector<4x256xbf16>, vector<256x512xbf16>, vector<4x512xf32> -> vector<4x512xf32>
    %20 = arith.addf %14, %19 : vector<4x512xf32>
    %cst_19 = arith.constant 0.000000e+00 : bf16
    %21 = vector.broadcast %cst_19 : bf16 to vector<2x512xbf16>
    %c0_20 = arith.constant 0 : index
    %c0_21 = arith.constant 0 : index
    %22 = vector.load %arg8[%c0_20, %c0_21] : memref<6x512xbf16, #tpu.memory_space<vmem>>, vector<2x512xbf16>
    tpu.vector_store %arg8[%c0_20, %c0_21], %21 {strides = array<i32>} : memref<6x512xbf16, #tpu.memory_space<vmem>>, vector<2x512xbf16>,
    %cst_22 = arith.constant 0.000000e+00 : f32
    %23 = vector.broadcast %cst_22 : f32 to vector<4x512xf32>
    %24 = arith.maximumf %20, %23 : vector<4x512xf32>
    %25 = arith.truncf %24 : vector<4x512xf32> to vector<4x512xbf16>
    %c2_23 = arith.constant 2 : index
    %c0_24 = arith.constant 0 : index
    %26 = vector.load %arg8[%c2_23, %c0_24] : memref<6x512xbf16, #tpu.memory_space<vmem>>, vector<4x512xbf16>
    tpu.vector_store %arg8[%c2_23, %c0_24], %25 {strides = array<i32>} : memref<6x512xbf16, #tpu.memory_space<vmem>>, vector<4x512xbf16>,
    %c0_25 = arith.constant 0 : index
    %c0_26 = arith.constant 0 : index
    %27 = vector.load %arg6[%c0_25, %c0_26] : memref<1x128xf32, #tpu.memory_space<vmem>>, vector<1x128xf32>
    %28 = vector.shape_cast %27 : vector<1x128xf32> to vector<1x128xf32>
    %29 = vector.broadcast %28 : vector<1x128xf32> to vector<4x128xf32>
    %c1_27 = arith.constant 1 : index
    %c0_28 = arith.constant 0 : index
    %30 = vector.load %arg8[%c1_27, %c0_28] : memref<6x512xbf16, #tpu.memory_space<vmem>>, vector<4x512xbf16>
    %c0_29 = arith.constant 0 : index
    %c0_30 = arith.constant 0 : index
    %c0_31 = arith.constant 0 : index
    %31 = vector.load %arg4[%c0_29, %c0_30, %c0_31] : memref<2x512x128xbf16, #tpu.memory_space<vmem>>, vector<1x512x128xbf16>
    %32 = vector.shape_cast %31 : vector<1x512x128xbf16> to vector<512x128xbf16>
    %cst_32 = arith.constant dense<0.000000e+00> : vector<4x128xf32>
    %33 = tpu.matmul %30, %32, %cst_32 {dimension_numbers = #tpu.dot_dimension_numbers<[1], [0], [0], [1], [0, 0, 1, 1], [], []>} : vector<4x512xbf16>, vector<512x128xbf16>, vector<4x128xf32> -> vector<4x128xf32>
    %34 = arith.addf %29, %33 : vector<4x128xf32>
    %c0_33 = arith.constant 0 : index
    %c0_34 = arith.constant 0 : index
    %c0_35 = arith.constant 0 : index
    %35 = vector.load %arg1[%c0_33, %c0_34, %c0_35] : memref<1x6x256xbf16, #tpu.memory_space<vmem>>, vector<1x4x256xbf16>
    %36 = vector.shape_cast %35 : vector<1x4x256xbf16> to vector<4x256xbf16>
    %c0_36 = arith.constant 0 : index
    %c0_37 = arith.constant 0 : index
    %c0_38 = arith.constant 0 : index
    %37 = vector.load %arg5[%c0_36, %c0_37, %c0_38] : memref<2x256x128xbf16, #tpu.memory_space<vmem>>, vector<1x256x128xbf16>
    %38 = vector.shape_cast %37 : vector<1x256x128xbf16> to vector<256x128xbf16>
    %cst_39 = arith.constant dense<0.000000e+00> : vector<4x128xf32>
    %39 = tpu.matmul %36, %38, %cst_39 {dimension_numbers = #tpu.dot_dimension_numbers<[1], [0], [0], [1], [0, 0, 1, 1], [], []>} : vector<4x256xbf16>, vector<256x128xbf16>, vector<4x128xf32> -> vector<4x128xf32>
    %40 = arith.addf %34, %39 : vector<4x128xf32>
    %c2_40 = arith.constant 2 : index
    %c0_41 = arith.constant 0 : index
    %41 = vector.load %arg8[%c2_40, %c0_41] : memref<6x512xbf16, #tpu.memory_space<vmem>>, vector<4x512xbf16>
    %c1_42 = arith.constant 1 : index
    %c0_43 = arith.constant 0 : index
    %c0_44 = arith.constant 0 : index
    %42 = vector.load %arg4[%c1_42, %c0_43, %c0_44] : memref<2x512x128xbf16, #tpu.memory_space<vmem>>, vector<1x512x128xbf16>
    %43 = vector.shape_cast %42 : vector<1x512x128xbf16> to vector<512x128xbf16>
    %cst_45 = arith.constant dense<0.000000e+00> : vector<4x128xf32>
    %44 = tpu.matmul %41, %43, %cst_45 {dimension_numbers = #tpu.dot_dimension_numbers<[1], [0], [0], [1], [0, 0, 1, 1], [], []>} : vector<4x512xbf16>, vector<512x128xbf16>, vector<4x128xf32> -> vector<4x128xf32>
    %45 = arith.addf %40, %44 : vector<4x128xf32>
    %c0_46 = arith.constant 0 : index
    %c1_47 = arith.constant 1 : index
    %c0_48 = arith.constant 0 : index
    %46 = vector.load %arg1[%c0_46, %c1_47, %c0_48] : memref<1x6x256xbf16, #tpu.memory_space<vmem>>, vector<1x4x256xbf16>
    %47 = vector.shape_cast %46 : vector<1x4x256xbf16> to vector<4x256xbf16>
    %c1_49 = arith.constant 1 : index
    %c0_50 = arith.constant 0 : index
    %c0_51 = arith.constant 0 : index
    %48 = vector.load %arg5[%c1_49, %c0_50, %c0_51] : memref<2x256x128xbf16, #tpu.memory_space<vmem>>, vector<1x256x128xbf16>
    %49 = vector.shape_cast %48 : vector<1x256x128xbf16> to vector<256x128xbf16>
    %cst_52 = arith.constant dense<0.000000e+00> : vector<4x128xf32>
    %50 = tpu.matmul %47, %49, %cst_52 {dimension_numbers = #tpu.dot_dimension_numbers<[1], [0], [0], [1], [0, 0, 1, 1], [], []>} : vector<4x256xbf16>, vector<256x128xbf16>, vector<4x128xf32> -> vector<4x128xf32>
    %51 = arith.addf %45, %50 : vector<4x128xf32>
    %cst_53 = arith.constant 0.000000e+00 : f32
    %52 = vector.broadcast %cst_53 : f32 to vector<4x128xf32>
    %53 = arith.maximumf %51, %52 : vector<4x128xf32>
    %c0_54 = arith.constant 0 : index
    %c0_55 = arith.constant 0 : index
    %c0_56 = arith.constant 0 : index
    %54 = vector.load %arg7[%c0_54, %c0_55, %c0_56] : memref<1x4x128xf32, #tpu.memory_space<vmem>>, vector<1x4x128xf32>
    %55 = vector.shape_cast %54 : vector<1x4x128xf32> to vector<4x128xf32>
    %56 = vector.shape_cast %53 : vector<4x128xf32> to vector<1x4x128xf32>
    tpu.vector_store %arg7[%c0_54, %c0_55, %c0_56], %56 {strides = array<i32>} : memref<1x4x128xf32, #tpu.memory_space<vmem>>, vector<1x4x128xf32>,
    return
  }
  func.func @transform_0(%arg0: i32) -> (i32, i32, i32) {
    %c0_i32 = arith.constant 0 : i32
    %c0_i32_0 = arith.constant 0 : i32
    %c0_i32_1 = arith.constant 0 : i32
    return %arg0, %c0_i32, %c0_i32_0 : i32, i32, i32
  }
  func.func @transform_1(%arg0: i32) -> (i32, i32, i32) {
    %c0_i32 = arith.constant 0 : i32
    %c0_i32_0 = arith.constant 0 : i32
    %c0_i32_1 = arith.constant 0 : i32
    %c0_i32_2 = arith.constant 0 : i32
    return %c0_i32, %c0_i32_0, %c0_i32_1 : i32, i32, i32
  }
  func.func @transform_2(%arg0: i32) -> (i32, i32) {
    %c0_i32 = arith.constant 0 : i32
    %c0_i32_0 = arith.constant 0 : i32
    %c0_i32_1 = arith.constant 0 : i32
    return %c0_i32, %c0_i32_0 : i32, i32
  }
  func.func @transform_3(%arg0: i32) -> (i32, i32, i32) {
    %c0_i32 = arith.constant 0 : i32
    %c0_i32_0 = arith.constant 0 : i32
    %c0_i32_1 = arith.constant 0 : i32
    %c0_i32_2 = arith.constant 0 : i32
    return %c0_i32, %c0_i32_0, %c0_i32_1 : i32, i32, i32
  }
  func.func @transform_4(%arg0: i32) -> (i32, i32, i32) {
    %c0_i32 = arith.constant 0 : i32
    %c0_i32_0 = arith.constant 0 : i32
    %c0_i32_1 = arith.constant 0 : i32
    %c0_i32_2 = arith.constant 0 : i32
    return %c0_i32, %c0_i32_0, %c0_i32_1 : i32, i32, i32
  }
  func.func @transform_5(%arg0: i32) -> (i32, i32) {
    %c0_i32 = arith.constant 0 : i32
    %c0_i32_0 = arith.constant 0 : i32
    %c0_i32_1 = arith.constant 0 : i32
    return %c0_i32, %c0_i32_0 : i32, i32
  }
  func.func @transform_6(%arg0: i32) -> (i32, i32, i32) {
    %c0_i32 = arith.constant 0 : i32
    %c0_i32_0 = arith.constant 0 : i32
    %c0_i32_1 = arith.constant 0 : i32
    return %arg0, %c0_i32, %c0_i32_0 : i32, i32, i32
  }
}

</mosaic_0001>

<llo_original>
// kernel: down_connection_pallas.1
$region0: #{down_connection_pallas.1}
  #allocation0 [shape = 'u32[]', space=smem, size = 0x4, offset = 0x4, fixed_abs, tag = 'smem constant byte address 0x4 - core index']
  #allocation1 [shape = 'u32[144,128]{1,0:T(1,128)}', space=vmem, size = 0x12000, scoped, tag = 'internal scratch']
  #allocation2 [shape = 'bf16[6,512]{1,0:T(8,128)(2,1)}', space=vmem, size = 0x2000, scoped, tag = 'scratch operand']
  %s0 = inlined_call_operand.vmem [shape: bf16[2,6,256], index: 0, kind: input, shape index: {}]
  %s1 = inlined_call_operand.vmem [shape: bf16[3,256,512], index: 1, kind: input, shape index: {}]
  %s2 = inlined_call_operand.vmem [shape: f32[1,512], index: 2, kind: input, shape index: {}]
  %s3 = inlined_call_operand.vmem [shape: bf16[2,512,128], index: 3, kind: input, shape index: {}]
  %s4 = inlined_call_operand.vmem [shape: bf16[2,256,128], index: 4, kind: input, shape index: {}]
  %s5 = inlined_call_operand.vmem [shape: f32[1,128], index: 5, kind: input, shape index: {}]
  %s6 = inlined_call_operand.vmem [shape: f32[2,4,128], index: 6, kind: output, shape index: {}]
  %s7 = sld [smem:[#allocation0]]
  $region57: #{down_connection_pallas.1} parent=0
    _
  %s9 = ssub.s32 1, %s7
  %s10 = scalar_select 0, %s9, %s7
  loop: start=0, step=1, limit=4
  $region2: #{down_connection_pallas.1} parent=0 // loop_pre_header
    _
  $region3: #{down_connection_pallas.1} parent=0 // loop_header
    %s12 = sphi 0, %s16
    %p13 = scmp.ge.s32.totalorder %s12, 4
    %s22 = sphi 0, %s24
    %s25 = sphi 0, %s22
    %s26 = sphi 0, %s25
    %s42 = sphi 0, %s26
    %s46 = sphi 0, %s46
    %s48 = sphi 0, %s46
    %s49 = sphi 0, %s48
    %s63 = sphi 0, %s49
    %s67 = sphi 0, %s67
    %s69 = sphi 0, %s67
    %s70 = sphi 0, %s69
    %s84 = sphi 0, %s70
    %s88 = sphi 0, %s88
    %s90 = sphi 0, %s88
    %s91 = sphi 0, %s90
    %s105 = sphi 0, %s91
    %s109 = sphi 0, %s109
    %s111 = sphi 0, %s109
    %s112 = sphi 0, %s111
    %s126 = sphi 0, %s112
    %s130 = sphi 0, %s130
    %s132 = sphi 0, %s130
    %s133 = sphi 0, %s132
    %s147 = sphi 0, %s133
    %s153 = sphi 0, %s155
    %s156 = sphi 0, %s153
    %s157 = sphi 0, %s156
    %s173 = sphi 0, %s157
  $region4: #{down_connection_pallas.1} parent=0 // loop_header_branch
    %15 = sbr.rel (%p13) target = $region8
  $region5: #{down_connection_pallas.1} parent=0 // loop_body
    %s17 = ssub.s32 %s12, 1
    %s18 = ssub.s32 %s12, 2
    %s19 = sadd.s32 %s12, 1
    %s20 = ssub.s32 %s12, %s19
    %p21 = scmp.eq.s32.totalorder %s20, 0
    %s23 = sadd.s32 %s22, 1
    %s24 = scalar_select %p21, %s22, %s23
    %p27 = pneg %p21
    %p28 = scmp.eq.s32.totalorder %s12, 1
    %p29 = por %p27, %p28
    %p30 = scmp.ne.s32.totalorder %s22, %s25
    %p31 = scmp.eq.s32.totalorder %s12, 0
    %p32 = por %p30, %p31
    %p33 = scmp.ne.s32.totalorder %s22, %s25
    %p34 = scmp.eq.s32.totalorder %s17, 1
    %p35 = por %p33, %p34
    %p36 = scmp.ne.s32.totalorder %s25, %s26
    %p37 = scmp.eq.s32.totalorder %s17, 0
    %p38 = por %p36, %p37
    %p39 = scmp.ne.s32.totalorder %s25, %s26
    %p40 = scmp.eq.s32.totalorder %s18, 1
    %p41 = por %p39, %p40
    %p43 = scmp.ne.s32.totalorder %s26, %s42
    %p44 = scmp.eq.s32.totalorder %s18, 0
    %p45 = por %p43, %p44
    %s47 = sadd.s32 %s46, 1
    %p50 = scmp.eq.s32.totalorder %s12, 1
    %p51 = scmp.ne.s32.totalorder %s46, %s48
    %p52 = scmp.eq.s32.totalorder %s12, 0
    %p53 = por %p51, %p52
    %p54 = scmp.ne.s32.totalorder %s46, %s48
    %p55 = scmp.eq.s32.totalorder %s17, 1
    %p56 = por %p54, %p55
    %p57 = scmp.ne.s32.totalorder %s48, %s49
    %p58 = scmp.eq.s32.totalorder %s17, 0
    %p59 = por %p57, %p58
    %p60 = scmp.ne.s32.totalorder %s48, %s49
    %p61 = scmp.eq.s32.totalorder %s18, 1
    %p62 = por %p60, %p61
    %p64 = scmp.ne.s32.totalorder %s49, %s63
    %p65 = scmp.eq.s32.totalorder %s18, 0
    %p66 = por %p64, %p65
    %s68 = sadd.s32 %s67, 1
    %p71 = scmp.eq.s32.totalorder %s12, 1
    %p72 = scmp.ne.s32.totalorder %s67, %s69
    %p73 = scmp.eq.s32.totalorder %s12, 0
    %p74 = por %p72, %p73
    %p75 = scmp.ne.s32.totalorder %s67, %s69
    %p76 = scmp.eq.s32.totalorder %s17, 1
    %p77 = por %p75, %p76
    %p78 = scmp.ne.s32.totalorder %s69, %s70
    %p79 = scmp.eq.s32.totalorder %s17, 0
    %p80 = por %p78, %p79
    %p81 = scmp.ne.s32.totalorder %s69, %s70
    %p82 = scmp.eq.s32.totalorder %s18, 1
    %p83 = por %p81, %p82
    %p85 = scmp.ne.s32.totalorder %s70, %s84
    %p86 = scmp.eq.s32.totalorder %s18, 0
    %p87 = por %p85, %p86
    %s89 = sadd.s32 %s88, 1
    %p92 = scmp.eq.s32.totalorder %s12, 1
    %p93 = scmp.ne.s32.totalorder %s88, %s90
    %p94 = scmp.eq.s32.totalorder %s12, 0
    %p95 = por %p93, %p94
    %p96 = scmp.ne.s32.totalorder %s88, %s90
    %p97 = scmp.eq.s32.totalorder %s17, 1
    %p98 = por %p96, %p97
    %p99 = scmp.ne.s32.totalorder %s90, %s91
    %p100 = scmp.eq.s32.totalorder %s17, 0
    %p101 = por %p99, %p100
    %p102 = scmp.ne.s32.totalorder %s90, %s91
    %p103 = scmp.eq.s32.totalorder %s18, 1
    %p104 = por %p102, %p103
    %p106 = scmp.ne.s32.totalorder %s91, %s105
    %p107 = scmp.eq.s32.totalorder %s18, 0
    %p108 = por %p106, %p107
    %s110 = sadd.s32 %s109, 1
    %p113 = scmp.eq.s32.totalorder %s12, 1
    %p114 = scmp.ne.s32.totalorder %s109, %s111
    %p115 = scmp.eq.s32.totalorder %s12, 0
    %p116 = por %p114, %p115
    %p117 = scmp.ne.s32.totalorder %s109, %s111
    %p118 = scmp.eq.s32.totalorder %s17, 1
    %p119 = por %p117, %p118
    %p120 = scmp.ne.s32.totalorder %s111, %s112
    %p121 = scmp.eq.s32.totalorder %s17, 0
    %p122 = por %p120, %p121
    %p123 = scmp.ne.s32.totalorder %s111, %s112
    %p124 = scmp.eq.s32.totalorder %s18, 1
    %p125 = por %p123, %p124
    %p127 = scmp.ne.s32.totalorder %s112, %s126
    %p128 = scmp.eq.s32.totalorder %s18, 0
    %p129 = por %p127, %p128
    %s131 = sadd.s32 %s130, 1
    %p134 = scmp.eq.s32.totalorder %s12, 1
    %p135 = scmp.ne.s32.totalorder %s130, %s132
    %p136 = scmp.eq.s32.totalorder %s12, 0
    %p137 = por %p135, %p136
    %p138 = scmp.ne.s32.totalorder %s130, %s132
    %p139 = scmp.eq.s32.totalorder %s17, 1
    %p140 = por %p138, %p139
    %p141 = scmp.ne.s32.totalorder %s132, %s133
    %p142 = scmp.eq.s32.totalorder %s17, 0
    %p143 = por %p141, %p142
    %p144 = scmp.ne.s32.totalorder %s132, %s133
    %p145 = scmp.eq.s32.totalorder %s18, 1
    %p146 = por %p144, %p145
    %p148 = scmp.ne.s32.totalorder %s133, %s147
    %p149 = scmp.eq.s32.totalorder %s18, 0
    %p150 = por %p148, %p149
    %s151 = ssub.s32 %s12, %s19
    %p152 = scmp.eq.s32.totalorder %s151, 0
    %s154 = sadd.s32 %s153, 1
    %s155 = scalar_select %p152, %s153, %s154
    %p158 = pneg %p152
    %p159 = scmp.eq.s32.totalorder %s12, 1
    %p160 = por %p158, %p159
    %p161 = scmp.ne.s32.totalorder %s153, %s156
    %p162 = scmp.eq.s32.totalorder %s12, 0
    %p163 = por %p161, %p162
    %p164 = scmp.ne.s32.totalorder %s153, %s156
    %p165 = scmp.eq.s32.totalorder %s17, 1
    %p166 = por %p164, %p165
    %p167 = scmp.ne.s32.totalorder %s156, %s157
    %p168 = scmp.eq.s32.totalorder %s17, 0
    %p169 = por %p167, %p168
    %p170 = scmp.ne.s32.totalorder %s156, %s157
    %p171 = scmp.eq.s32.totalorder %s18, 1
    %p172 = por %p170, %p171
    %p174 = scmp.ne.s32.totalorder %s157, %s173
    %p175 = scmp.eq.s32.totalorder %s18, 0
    %p176 = por %p174, %p175
    %p177 = scmp.le.s32.totalorder 1, %s12
    %p178 = scmp.lt.s32.totalorder %s12, 3
    %p179 = pnand %p177, %p178
    %p180 = pneg %p179
    // Predicated region
    $region9: #{down_connection_pallas.1} parent=5 // pred_check
      _
    $region10: #{down_connection_pallas.1} parent=5 // pred_check_branch
      %182 = sbr.rel (%p179) target = $region12
    $region11: #{down_connection_pallas.1} parent=5 // pred_region
      %s183 = ssub.s32 %s12, 1
      // Predicated region
      $region13: #{down_connection_pallas.1} parent=11 // pred_check
        %p184 = pneg %p59
      $region14: #{down_connection_pallas.1} parent=11 // pred_check_branch
        %186 = sbr.rel (%p184) target = $region16
      $region15: #{down_connection_pallas.1} parent=11 // pred_region
        _
      $region16: #{down_connection_pallas.1} parent=11 // pred_fallthru
        _
      // Predicated region
      $region17: #{down_connection_pallas.1} parent=11 // pred_check
        %p187 = pneg %p80
      $region18: #{down_connection_pallas.1} parent=11 // pred_check_branch
        %189 = sbr.rel (%p187) target = $region20
      $region19: #{down_connection_pallas.1} parent=11 // pred_region
        _
      $region20: #{down_connection_pallas.1} parent=11 // pred_fallthru
        _
      // Predicated region
      $region21: #{down_connection_pallas.1} parent=11 // pred_check
        %p190 = pneg %p101
      $region22: #{down_connection_pallas.1} parent=11 // pred_check_branch
        %192 = sbr.rel (%p190) target = $region24
      $region23: #{down_connection_pallas.1} parent=11 // pred_region
        _
      $region24: #{down_connection_pallas.1} parent=11 // pred_fallthru
        _
      // Predicated region
      $region25: #{down_connection_pallas.1} parent=11 // pred_check
        %p193 = pneg %p122
      $region26: #{down_connection_pallas.1} parent=11 // pred_check_branch
        %195 = sbr.rel (%p193) target = $region28
      $region27: #{down_connection_pallas.1} parent=11 // pred_region
        _
      $region28: #{down_connection_pallas.1} parent=11 // pred_fallthru
        _
      // Predicated region
      $region29: #{down_connection_pallas.1} parent=11 // pred_check
        %p196 = pneg %p143
      $region30: #{down_connection_pallas.1} parent=11 // pred_check_branch
        %198 = sbr.rel (%p196) target = $region32
      $region31: #{down_connection_pallas.1} parent=11 // pred_region
        _
      $region32: #{down_connection_pallas.1} parent=11 // pred_fallthru
        _
    $region12: #{down_connection_pallas.1} parent=5 // pred_fallthru
      _
    %p199 = scmp.lt.s32.totalorder %s12, 2
    // Predicated region
    $region33: #{down_connection_pallas.1} parent=5 // pred_check
      %p200 = pneg %p199
    $region34: #{down_connection_pallas.1} parent=5 // pred_check_branch
      %202 = sbr.rel (%p200) target = $region36
    $region35: #{down_connection_pallas.1} parent=5 // pred_region
      // Predicated region
      $region37: #{down_connection_pallas.1} parent=35 // pred_check
        %p203 = pneg %p32
      $region38: #{down_connection_pallas.1} parent=35 // pred_check_branch
        %205 = sbr.rel (%p203) target = $region40
      $region39: #{down_connection_pallas.1} parent=35 // pred_region
        %p206 = scmp.lt.s32.totalorder %s12, 1
        %s207 = scalar_select %p206, %s12, 1
        %s208 = smul.addr %s207, 2
        %s209 = smul.addr %s208, 4
        %s210 = scalar_lea.vmem %s0, %s209
      $region40: #{down_connection_pallas.1} parent=35 // pred_fallthru
        _
    $region36: #{down_connection_pallas.1} parent=5 // pred_fallthru
      _
    %p211 = scmp.le.s32.totalorder 1, %s12
    %p212 = scmp.lt.s32.totalorder %s12, 3
    %p213 = pnand %p211, %p212
    %p214 = pneg %p213
    // Predicated region
    $region41: #{down_connection_pallas.1} parent=5 // pred_check
      _
    $region42: #{down_connection_pallas.1} parent=5 // pred_check_branch
      %216 = sbr.rel (%p213) target = $region44
    $region43: #{down_connection_pallas.1} parent=5 // pred_region
      %s217 = ssub.s32 %s12, 1
      %p218 = scmp.lt.s32.totalorder %s17, 1
      %s219 = scalar_select %p218, %s17, 1
      %s220 = smul.addr %s219, 2
      %s221 = smul.addr %s220, 4
      %s222 = scalar_lea.vmem %s0, %s221
      %p223 = pneg %p38
      %p224 = pneg %p35
      %p225 = pneg %p59
      %p226 = pneg %p56
      %p227 = pneg %p80
      %p228 = pneg %p77
      %p229 = pneg %p101
      %p230 = pneg %p98
      %p231 = pneg %p122
      %p232 = pneg %p119
      %p233 = pneg %p143
      %p234 = pneg %p140
      %p235 = pneg %p169
      %p236 = pneg %p166
      %p237 = scmp.lt.s32.totalorder %s17, 1
      %s238 = scalar_select %p237, %s17, 1
      %s239 = smul.addr %s238, 4
      %s240 = scalar_lea.vmem %s6, %s239
      %p241 = scmp.lt.s32.totalorder %s17, 1
      %s242 = scalar_select %p241, %s17, 1
      %s243 = smul.addr %s242, 2
      %s244 = smul.addr %s243, 4
      %s245 = scalar_lea.vmem %s0, %s244
      %p246 = scmp.lt.s32.totalorder %s17, 1
      %s247 = scalar_select %p246, %s17, 1
      %s248 = smul.addr %s247, 4
      %s249 = scalar_lea.vmem %s6, %s248
      %v251 = vld [vmem:[%s2] sm:$0xf]
      %v253 = vlaneseq
      %v254 = vshrl.u32 %v253, 7
      %v255 = vsub.s32 0, %v254
      %v256 = vrot.slane %v251, %v255
      %v257 = vlaneseq
      %v258 = vshrl.u32 %v257, 7
      %v259 = vsub.s32 1, %v258
      %v260 = vrot.slane %v251, %v259
      %v261 = vlaneseq
      %v262 = vshrl.u32 %v261, 7
      %v263 = vsub.s32 2, %v262
      %v264 = vrot.slane %v251, %v263
      %v265 = vlaneseq
      %v266 = vshrl.u32 %v265, 7
      %v267 = vsub.s32 3, %v266
      %v268 = vrot.slane %v251, %v267
      %v273 = vld [vmem:[%s245] sm:$0x33]
      %v274 = vld [vmem:[%s1] sm:$0xff]
      %v275 = vld [vmem:[%s1 + $0x8] sm:$0xff]
      %v276 = vld [vmem:[%s1 + $0x10] sm:$0xff]
      %v277 = vld [vmem:[%s1 + $0x18] sm:$0xff]
      %v278 = vld [vmem:[%s1 + $0x20] sm:$0xff]
      %v279 = vld [vmem:[%s1 + $0x28] sm:$0xff]
      %v280 = vld [vmem:[%s1 + $0x30] sm:$0xff]
      %v281 = vld [vmem:[%s1 + $0x38] sm:$0xff]
      %v282 = vld [vmem:[%s1 + $0x40] sm:$0xff]
      %v283 = vld [vmem:[%s1 + $0x48] sm:$0xff]
      %v284 = vld [vmem:[%s1 + $0x50] sm:$0xff]
      %v285 = vld [vmem:[%s1 + $0x58] sm:$0xff]
      %v286 = vld [vmem:[%s1 + $0x60] sm:$0xff]
      %v287 = vld [vmem:[%s1 + $0x68] sm:$0xff]
      %v288 = vld [vmem:[%s1 + $0x70] sm:$0xff]
      %v289 = vld [vmem:[%s1 + $0x78] sm:$0xff]
      %v290 = vld [vmem:[%s1 + $0x80] sm:$0xff]
      %v291 = vld [vmem:[%s1 + $0x88] sm:$0xff]
      %v292 = vld [vmem:[%s1 + $0x90] sm:$0xff]
      %v293 = vld [vmem:[%s1 + $0x98] sm:$0xff]
      %v294 = vld [vmem:[%s1 + $0xa0] sm:$0xff]
      %v295 = vld [vmem:[%s1 + $0xa8] sm:$0xff]
      %v296 = vld [vmem:[%s1 + $0xb0] sm:$0xff]
      %v297 = vld [vmem:[%s1 + $0xb8] sm:$0xff]
      %v298 = vld [vmem:[%s1 + $0xc0] sm:$0xff]
      %v299 = vld [vmem:[%s1 + $0xc8] sm:$0xff]
      %v300 = vld [vmem:[%s1 + $0xd0] sm:$0xff]
      %v301 = vld [vmem:[%s1 + $0xd8] sm:$0xff]
      %v302 = vld [vmem:[%s1 + $0xe0] sm:$0xff]
      %v303 = vld [vmem:[%s1 + $0xe8] sm:$0xff]
      %v304 = vld [vmem:[%s1 + $0xf0] sm:$0xff]
      %v305 = vld [vmem:[%s1 + $0xf8] sm:$0xff]
      %v306 = vld [vmem:[%s1 + $0x100] sm:$0xff]
      %v307 = vld [vmem:[%s1 + $0x108] sm:$0xff]
      %v308 = vld [vmem:[%s1 + $0x110] sm:$0xff]
      %v309 = vld [vmem:[%s1 + $0x118] sm:$0xff]
      %v310 = vld [vmem:[%s1 + $0x120] sm:$0xff]
      %v311 = vld [vmem:[%s1 + $0x128] sm:$0xff]
      %v312 = vld [vmem:[%s1 + $0x130] sm:$0xff]
      %v313 = vld [vmem:[%s1 + $0x138] sm:$0xff]
      %v314 = vld [vmem:[%s1 + $0x140] sm:$0xff]
      %v315 = vld [vmem:[%s1 + $0x148] sm:$0xff]
      %v316 = vld [vmem:[%s1 + $0x150] sm:$0xff]
      %v317 = vld [vmem:[%s1 + $0x158] sm:$0xff]
      %v318 = vld [vmem:[%s1 + $0x160] sm:$0xff]
      %v319 = vld [vmem:[%s1 + $0x168] sm:$0xff]
      %v320 = vld [vmem:[%s1 + $0x170] sm:$0xff]
      %v321 = vld [vmem:[%s1 + $0x178] sm:$0xff]
      %v322 = vld [vmem:[%s1 + $0x180] sm:$0xff]
      %v323 = vld [vmem:[%s1 + $0x188] sm:$0xff]
      %v324 = vld [vmem:[%s1 + $0x190] sm:$0xff]
      %v325 = vld [vmem:[%s1 + $0x198] sm:$0xff]
      %v326 = vld [vmem:[%s1 + $0x1a0] sm:$0xff]
      %v327 = vld [vmem:[%s1 + $0x1a8] sm:$0xff]
      %v328 = vld [vmem:[%s1 + $0x1b0] sm:$0xff]
      %v329 = vld [vmem:[%s1 + $0x1b8] sm:$0xff]
      %v330 = vld [vmem:[%s1 + $0x1c0] sm:$0xff]
      %v331 = vld [vmem:[%s1 + $0x1c8] sm:$0xff]
      %v332 = vld [vmem:[%s1 + $0x1d0] sm:$0xff]
      %v333 = vld [vmem:[%s1 + $0x1d8] sm:$0xff]
      %v334 = vld [vmem:[%s1 + $0x1e0] sm:$0xff]
      %v335 = vld [vmem:[%s1 + $0x1e8] sm:$0xff]
      %v336 = vld [vmem:[%s1 + $0x1f0] sm:$0xff]
      %v337 = vld [vmem:[%s1 + $0x1f8] sm:$0xff]
      %v339 = vunpack.c.l.b16 %v273
      %v340 = vunpack.c.h.b16 %v273
      %v341 = vpack.c.b16 %v339, %v339
      %v342 = vpack.c.b16 %v340, %v340
      %v409 = vunpack.c.l.b16 %v274
      %v410 = vunpack.c.h.b16 %v274
      %v411 = vunpack.c.l.b16 %v275
      %v412 = vunpack.c.h.b16 %v275
      %v413 = vunpack.c.l.b16 %v276
      %v414 = vunpack.c.h.b16 %v276
      %v415 = vunpack.c.l.b16 %v277
      %v416 = vunpack.c.h.b16 %v277
      %v417 = vunpack.c.l.b16 %v278
      %v418 = vunpack.c.h.b16 %v278
      %v419 = vunpack.c.l.b16 %v279
      %v420 = vunpack.c.h.b16 %v279
      %v421 = vunpack.c.l.b16 %v280
      %v422 = vunpack.c.h.b16 %v280
      %v423 = vunpack.c.l.b16 %v281
      %v424 = vunpack.c.h.b16 %v281
      %v425 = vunpack.c.l.b16 %v282
      %v426 = vunpack.c.h.b16 %v282
      %v427 = vunpack.c.l.b16 %v283
      %v428 = vunpack.c.h.b16 %v283
      %v429 = vunpack.c.l.b16 %v284
      %v430 = vunpack.c.h.b16 %v284
      %v431 = vunpack.c.l.b16 %v285
      %v432 = vunpack.c.h.b16 %v285
      %v433 = vunpack.c.l.b16 %v286
      %v434 = vunpack.c.h.b16 %v286
      %v435 = vunpack.c.l.b16 %v287
      %v436 = vunpack.c.h.b16 %v287
      %v437 = vunpack.c.l.b16 %v288
      %v438 = vunpack.c.h.b16 %v288
      %v439 = vunpack.c.l.b16 %v289
      %v440 = vunpack.c.h.b16 %v289
      %v441 = vunpack.c.l.b16 %v290
      %v442 = vunpack.c.h.b16 %v290
      %v443 = vunpack.c.l.b16 %v291
      %v444 = vunpack.c.h.b16 %v291
      %v445 = vunpack.c.l.b16 %v292
      %v446 = vunpack.c.h.b16 %v292
      %v447 = vunpack.c.l.b16 %v293
      %v448 = vunpack.c.h.b16 %v293
      %v449 = vunpack.c.l.b16 %v294
      %v450 = vunpack.c.h.b16 %v294
      %v451 = vunpack.c.l.b16 %v295
      %v452 = vunpack.c.h.b16 %v295
      %v453 = vunpack.c.l.b16 %v296
      %v454 = vunpack.c.h.b16 %v296
      %v455 = vunpack.c.l.b16 %v297
      %v456 = vunpack.c.h.b16 %v297
      %v457 = vunpack.c.l.b16 %v298
      %v458 = vunpack.c.h.b16 %v298
      %v459 = vunpack.c.l.b16 %v299
      %v460 = vunpack.c.h.b16 %v299
      %v461 = vunpack.c.l.b16 %v300
      %v462 = vunpack.c.h.b16 %v300
      %v463 = vunpack.c.l.b16 %v301
      %v464 = vunpack.c.h.b16 %v301
      %v465 = vunpack.c.l.b16 %v302
      %v466 = vunpack.c.h.b16 %v302
      %v467 = vunpack.c.l.b16 %v303
      %v468 = vunpack.c.h.b16 %v303
      %v469 = vunpack.c.l.b16 %v304
      %v470 = vunpack.c.h.b16 %v304
      %v471 = vunpack.c.l.b16 %v305
      %v472 = vunpack.c.h.b16 %v305
      %v473 = vunpack.c.l.b16 %v306
      %v474 = vunpack.c.h.b16 %v306
      %v475 = vunpack.c.l.b16 %v307
      %v476 = vunpack.c.h.b16 %v307
      %v477 = vunpack.c.l.b16 %v308
      %v478 = vunpack.c.h.b16 %v308
      %v479 = vunpack.c.l.b16 %v309
      %v480 = vunpack.c.h.b16 %v309
      %v481 = vunpack.c.l.b16 %v310
      %v482 = vunpack.c.h.b16 %v310
      %v483 = vunpack.c.l.b16 %v311
      %v484 = vunpack.c.h.b16 %v311
      %v485 = vunpack.c.l.b16 %v312
      %v486 = vunpack.c.h.b16 %v312
      %v487 = vunpack.c.l.b16 %v313
      %v488 = vunpack.c.h.b16 %v313
      %v489 = vunpack.c.l.b16 %v314
      %v490 = vunpack.c.h.b16 %v314
      %v491 = vunpack.c.l.b16 %v315
      %v492 = vunpack.c.h.b16 %v315
      %v493 = vunpack.c.l.b16 %v316
      %v494 = vunpack.c.h.b16 %v316
      %v495 = vunpack.c.l.b16 %v317
      %v496 = vunpack.c.h.b16 %v317
      %v497 = vunpack.c.l.b16 %v318
      %v498 = vunpack.c.h.b16 %v318
      %v499 = vunpack.c.l.b16 %v319
      %v500 = vunpack.c.h.b16 %v319
      %v501 = vunpack.c.l.b16 %v320
      %v502 = vunpack.c.h.b16 %v320
      %v503 = vunpack.c.l.b16 %v321
      %v504 = vunpack.c.h.b16 %v321
      %v505 = vunpack.c.l.b16 %v322
      %v506 = vunpack.c.h.b16 %v322
      %v507 = vunpack.c.l.b16 %v323
      %v508 = vunpack.c.h.b16 %v323
      %v509 = vunpack.c.l.b16 %v324
      %v510 = vunpack.c.h.b16 %v324
      %v511 = vunpack.c.l.b16 %v325
      %v512 = vunpack.c.h.b16 %v325
      %v513 = vunpack.c.l.b16 %v326
      %v514 = vunpack.c.h.b16 %v326
      %v515 = vunpack.c.l.b16 %v327
      %v516 = vunpack.c.h.b16 %v327
      %v517 = vunpack.c.l.b16 %v328
      %v518 = vunpack.c.h.b16 %v328
      %v519 = vunpack.c.l.b16 %v329
      %v520 = vunpack.c.h.b16 %v329
      %v521 = vunpack.c.l.b16 %v330
      %v522 = vunpack.c.h.b16 %v330
      %v523 = vunpack.c.l.b16 %v331
      %v524 = vunpack.c.h.b16 %v331
      %v525 = vunpack.c.l.b16 %v332
      %v526 = vunpack.c.h.b16 %v332
      %v527 = vunpack.c.l.b16 %v333
      %v528 = vunpack.c.h.b16 %v333
      %v529 = vunpack.c.l.b16 %v334
      %v530 = vunpack.c.h.b16 %v334
      %v531 = vunpack.c.l.b16 %v335
      %v532 = vunpack.c.h.b16 %v335
      %v533 = vunpack.c.l.b16 %v336
      %v534 = vunpack.c.h.b16 %v336
      %v535 = vunpack.c.l.b16 %v337
      %v536 = vunpack.c.h.b16 %v337
      %v537 = vpack.c.b16 %v413, %v409
      %v538 = vpack.c.b16 %v414, %v410
      %v539 = vpack.c.b16 %v415, %v411
      %v540 = vpack.c.b16 %v416, %v412
      %v541 = vpack.c.b16 %v421, %v417
      %v542 = vpack.c.b16 %v422, %v418
      %v543 = vpack.c.b16 %v423, %v419
      %v544 = vpack.c.b16 %v424, %v420
      %v545 = vpack.c.b16 %v429, %v425
      %v546 = vpack.c.b16 %v430, %v426
      %v547 = vpack.c.b16 %v431, %v427
      %v548 = vpack.c.b16 %v432, %v428
      %v549 = vpack.c.b16 %v437, %v433
      %v550 = vpack.c.b16 %v438, %v434
      %v551 = vpack.c.b16 %v439, %v435
      %v552 = vpack.c.b16 %v440, %v436
      %v553 = vpack.c.b16 %v445, %v441
      %v554 = vpack.c.b16 %v446, %v442
      %v555 = vpack.c.b16 %v447, %v443
      %v556 = vpack.c.b16 %v448, %v444
      %v557 = vpack.c.b16 %v453, %v449
      %v558 = vpack.c.b16 %v454, %v450
      %v559 = vpack.c.b16 %v455, %v451
      %v560 = vpack.c.b16 %v456, %v452
      %v561 = vpack.c.b16 %v461, %v457
      %v562 = vpack.c.b16 %v462, %v458
      %v563 = vpack.c.b16 %v463, %v459
      %v564 = vpack.c.b16 %v464, %v460
      %v565 = vpack.c.b16 %v469, %v465
      %v566 = vpack.c.b16 %v470, %v466
      %v567 = vpack.c.b16 %v471, %v467
      %v568 = vpack.c.b16 %v472, %v468
      %v569 = vpack.c.b16 %v477, %v473
      %v570 = vpack.c.b16 %v478, %v474
      %v571 = vpack.c.b16 %v479, %v475
      %v572 = vpack.c.b16 %v480, %v476
      %v573 = vpack.c.b16 %v485, %v481
      %v574 = vpack.c.b16 %v486, %v482
      %v575 = vpack.c.b16 %v487, %v483
      %v576 = vpack.c.b16 %v488, %v484
      %v577 = vpack.c.b16 %v493, %v489
      %v578 = vpack.c.b16 %v494, %v490
      %v579 = vpack.c.b16 %v495, %v491
      %v580 = vpack.c.b16 %v496, %v492
      %v581 = vpack.c.b16 %v501, %v497
      %v582 = vpack.c.b16 %v502, %v498
      %v583 = vpack.c.b16 %v503, %v499
      %v584 = vpack.c.b16 %v504, %v500
      %v585 = vpack.c.b16 %v509, %v505
      %v586 = vpack.c.b16 %v510, %v506
      %v587 = vpack.c.b16 %v511, %v507
      %v588 = vpack.c.b16 %v512, %v508
      %v589 = vpack.c.b16 %v517, %v513
      %v590 = vpack.c.b16 %v518, %v514
      %v591 = vpack.c.b16 %v519, %v515
      %v592 = vpack.c.b16 %v520, %v516
      %v593 = vpack.c.b16 %v525, %v521
      %v594 = vpack.c.b16 %v526, %v522
      %v595 = vpack.c.b16 %v527, %v523
      %v596 = vpack.c.b16 %v528, %v524
      %v597 = vpack.c.b16 %v533, %v529
      %v598 = vpack.c.b16 %v534, %v530
      %v599 = vpack.c.b16 %v535, %v531
      %v600 = vpack.c.b16 %v536, %v532
      %665 = vmatprep.subr.bf16.mxu0 %v566
      %666 = vmatpush1.bf16.msra.mxu0 %v565
      %667 = vmatprep.subr.bf16.mxu0 %v562
      %668 = vmatpush1.bf16.msra.mxu0 %v561
      %669 = vmatprep.subr.bf16.mxu0 %v558
      %670 = vmatpush1.bf16.msra.mxu0 %v557
      %671 = vmatprep.subr.bf16.mxu0 %v554
      %672 = vmatpush1.bf16.msra.mxu0 %v553
      %673 = vmatprep.subr.bf16.mxu0 %v550
      %674 = vmatpush1.bf16.msra.mxu0 %v549
      %675 = vmatprep.subr.bf16.mxu0 %v546
      %676 = vmatpush1.bf16.msra.mxu0 %v545
      %677 = vmatprep.subr.bf16.mxu0 %v542
      %678 = vmatpush1.bf16.msra.mxu0 %v541
      %679 = vmatprep.subr.bf16.mxu0 %v538
      %680 = vmatpush1.bf16.msra.mxu0 %v537
      %681 = vmatprep.subr.bf16.mxu0 %v598
      %682 = vmatpush2.bf16.msra.mxu0 %v597
      %683 = vmatprep.subr.bf16.mxu0 %v594
      %684 = vmatpush2.bf16.msra.mxu0 %v593
      %685 = vmatprep.subr.bf16.mxu0 %v590
      %686 = vmatpush2.bf16.msra.mxu0 %v589
      %687 = vmatprep.subr.bf16.mxu0 %v586
      %688 = vmatpush2.bf16.msra.mxu0 %v585
      %689 = vmatprep.subr.bf16.mxu0 %v582
      %690 = vmatpush2.bf16.msra.mxu0 %v581
      %691 = vmatprep.subr.bf16.mxu0 %v578
      %692 = vmatpush2.bf16.msra.mxu0 %v577
      %693 = vmatprep.subr.bf16.mxu0 %v574
      %694 = vmatpush2.bf16.msra.mxu0 %v573
      %695 = vmatprep.subr.bf16.mxu0 %v570
      %696 = vmatpush2.bf16.msra.mxu0 %v569
      %697 = vmatprep.mubr.bf16.mxu0 %v342
      %698 = vmatmul.mubr.bf16.gmra.mxu0 %v341
      %v699 = vpop.f32.mrf.mxu0
      %v700 = vadd.f32 0.0, %v699
      %v701 = vpop.f32.mrf.mxu0
      %v702 = vadd.f32 0.0, %v701
      %v703 = vpop.f32.mrf.mxu0
      %v704 = vpop.f32.mrf.mxu0
      %705 = vdwg.mxu0
      %706 = vmatprep.subr.bf16.mxu0 %v568
      %707 = vmatpush1.bf16.msra.mxu0 %v567
      %708 = vmatprep.subr.bf16.mxu0 %v564
      %709 = vmatpush1.bf16.msra.mxu0 %v563
      %710 = vmatprep.subr.bf16.mxu0 %v560
      %711 = vmatpush1.bf16.msra.mxu0 %v559
      %712 = vmatprep.subr.bf16.mxu0 %v556
      %713 = vmatpush1.bf16.msra.mxu0 %v555
      %714 = vmatprep.subr.bf16.mxu0 %v552
      %715 = vmatpush1.bf16.msra.mxu0 %v551
      %716 = vmatprep.subr.bf16.mxu0 %v548
      %717 = vmatpush1.bf16.msra.mxu0 %v547
      %718 = vmatprep.subr.bf16.mxu0 %v544
      %719 = vmatpush1.bf16.msra.mxu0 %v543
      %720 = vmatprep.subr.bf16.mxu0 %v540
      %721 = vmatpush1.bf16.msra.mxu0 %v539
      %722 = vmatprep.subr.bf16.mxu0 %v600
      %723 = vmatpush2.bf16.msra.mxu0 %v599
      %724 = vmatprep.subr.bf16.mxu0 %v596
      %725 = vmatpush2.bf16.msra.mxu0 %v595
      %726 = vmatprep.subr.bf16.mxu0 %v592
      %727 = vmatpush2.bf16.msra.mxu0 %v591
      %728 = vmatprep.subr.bf16.mxu0 %v588
      %729 = vmatpush2.bf16.msra.mxu0 %v587
      %730 = vmatprep.subr.bf16.mxu0 %v584
      %731 = vmatpush2.bf16.msra.mxu0 %v583
      %732 = vmatprep.subr.bf16.mxu0 %v580
      %733 = vmatpush2.bf16.msra.mxu0 %v579
      %734 = vmatprep.subr.bf16.mxu0 %v576
      %735 = vmatpush2.bf16.msra.mxu0 %v575
      %736 = vmatprep.subr.bf16.mxu0 %v572
      %737 = vmatpush2.bf16.msra.mxu0 %v571
      %738 = vmatprep.mubr.bf16.mxu0 %v342
      %739 = vmatmul.mubr.bf16.gmra.mxu0 %v341
      %v740 = vpop.f32.mrf.mxu0
      %v741 = vadd.f32 0.0, %v740
      %v742 = vpop.f32.mrf.mxu0
      %v743 = vadd.f32 0.0, %v742
      %v744 = vpop.f32.mrf.mxu0
      %v745 = vpop.f32.mrf.mxu0
      %746 = vdwg.mxu0
      %v747 = vadd.f32 %v256, %v700
      %v748 = vadd.f32 %v260, %v702
      %v749 = vadd.f32 %v264, %v741
      %v750 = vadd.f32 %v268, %v743
      %v751 = vld [vmem:[%s245] sm:$0x77]
      %s752 = scalar_lea.vmem %s1, 512
      %v753 = vld [vmem:[%s752] sm:$0xff]
      %v754 = vld [vmem:[%s752 + $0x8] sm:$0xff]
      %v755 = vld [vmem:[%s752 + $0x10] sm:$0xff]
      %v756 = vld [vmem:[%s752 + $0x18] sm:$0xff]
      %v757 = vld [vmem:[%s752 + $0x20] sm:$0xff]
      %v758 = vld [vmem:[%s752 + $0x28] sm:$0xff]
      %v759 = vld [vmem:[%s752 + $0x30] sm:$0xff]
      %v760 = vld [vmem:[%s752 + $0x38] sm:$0xff]
      %v761 = vld [vmem:[%s752 + $0x40] sm:$0xff]
      %v762 = vld [vmem:[%s752 + $0x48] sm:$0xff]
      %v763 = vld [vmem:[%s752 + $0x50] sm:$0xff]
      %v764 = vld [vmem:[%s752 + $0x58] sm:$0xff]
      %v765 = vld [vmem:[%s752 + $0x60] sm:$0xff]
      %v766 = vld [vmem:[%s752 + $0x68] sm:$0xff]
      %v767 = vld [vmem:[%s752 + $0x70] sm:$0xff]
      %v768 = vld [vmem:[%s752 + $0x78] sm:$0xff]
      %v769 = vld [vmem:[%s752 + $0x80] sm:$0xff]
      %v770 = vld [vmem:[%s752 + $0x88] sm:$0xff]
      %v771 = vld [vmem:[%s752 + $0x90] sm:$0xff]
      %v772 = vld [vmem:[%s752 + $0x98] sm:$0xff]
      %v773 = vld [vmem:[%s752 + $0xa0] sm:$0xff]
      %v774 = vld [vmem:[%s752 + $0xa8] sm:$0xff]
      %v775 = vld [vmem:[%s752 + $0xb0] sm:$0xff]
      %v776 = vld [vmem:[%s752 + $0xb8] sm:$0xff]
      %v777 = vld [vmem:[%s752 + $0xc0] sm:$0xff]
      %v778 = vld [vmem:[%s752 + $0xc8] sm:$0xff]
      %v779 = vld [vmem:[%s752 + $0xd0] sm:$0xff]
      %v780 = vld [vmem:[%s752 + $0xd8] sm:$0xff]
      %v781 = vld [vmem:[%s752 + $0xe0] sm:$0xff]
      %v782 = vld [vmem:[%s752 + $0xe8] sm:$0xff]
      %v783 = vld [vmem:[%s752 + $0xf0] sm:$0xff]
      %v784 = vld [vmem:[%s752 + $0xf8] sm:$0xff]
      %v785 = vld [vmem:[%s752 + $0x100] sm:$0xff]
      %v786 = vld [vmem:[%s752 + $0x108] sm:$0xff]
      %v787 = vld [vmem:[%s752 + $0x110] sm:$0xff]
      %v788 = vld [vmem:[%s752 + $0x118] sm:$0xff]
      %v789 = vld [vmem:[%s752 + $0x120] sm:$0xff]
      %v790 = vld [vmem:[%s752 + $0x128] sm:$0xff]
      %v791 = vld [vmem:[%s752 + $0x130] sm:$0xff]
      %v792 = vld [vmem:[%s752 + $0x138] sm:$0xff]
      %v793 = vld [vmem:[%s752 + $0x140] sm:$0xff]
      %v794 = vld [vmem:[%s752 + $0x148] sm:$0xff]
      %v795 = vld [vmem:[%s752 + $0x150] sm:$0xff]
      %v796 = vld [vmem:[%s752 + $0x158] sm:$0xff]
      %v797 = vld [vmem:[%s752 + $0x160] sm:$0xff]
      %v798 = vld [vmem:[%s752 + $0x168] sm:$0xff]
      %v799 = vld [vmem:[%s752 + $0x170] sm:$0xff]
      %v800 = vld [vmem:[%s752 + $0x178] sm:$0xff]
      %v801 = vld [vmem:[%s752 + $0x180] sm:$0xff]
      %v802 = vld [vmem:[%s752 + $0x188] sm:$0xff]
      %v803 = vld [vmem:[%s752 + $0x190] sm:$0xff]
      %v804 = vld [vmem:[%s752 + $0x198] sm:$0xff]
      %v805 = vld [vmem:[%s752 + $0x1a0] sm:$0xff]
      %v806 = vld [vmem:[%s752 + $0x1a8] sm:$0xff]
      %v807 = vld [vmem:[%s752 + $0x1b0] sm:$0xff]
      %v808 = vld [vmem:[%s752 + $0x1b8] sm:$0xff]
      %v809 = vld [vmem:[%s752 + $0x1c0] sm:$0xff]
      %v810 = vld [vmem:[%s752 + $0x1c8] sm:$0xff]
      %v811 = vld [vmem:[%s752 + $0x1d0] sm:$0xff]
      %v812 = vld [vmem:[%s752 + $0x1d8] sm:$0xff]
      %v813 = vld [vmem:[%s752 + $0x1e0] sm:$0xff]
      %v814 = vld [vmem:[%s752 + $0x1e8] sm:$0xff]
      %v815 = vld [vmem:[%s752 + $0x1f0] sm:$0xff]
      %v816 = vld [vmem:[%s752 + $0x1f8] sm:$0xff]
      %v818 = vunpack.c.l.b16 %v751
      %v819 = vunpack.c.h.b16 %v751
      %v820 = vpack.c.b16 %v818, %v818
      %v821 = vpack.c.b16 %v819, %v819
      %v823 = vshrl.u32 %v820, 16
      %v825 = vshll.u32 %v820, 16
      %v827 = vrot.slane %v825, 1
      %v828 = vor.u32 %v823, %v827
      %v830 = vshrl.u32 %v821, 16
      %v832 = vshll.u32 %v821, 16
      %v834 = vrot.slane %v832, 1
      %v835 = vor.u32 %v830, %v834
      %v902 = vunpack.c.l.b16 %v753
      %v903 = vunpack.c.h.b16 %v753
      %v904 = vunpack.c.l.b16 %v754
      %v905 = vunpack.c.h.b16 %v754
      %v906 = vunpack.c.l.b16 %v755
      %v907 = vunpack.c.h.b16 %v755
      %v908 = vunpack.c.l.b16 %v756
      %v909 = vunpack.c.h.b16 %v756
      %v910 = vunpack.c.l.b16 %v757
      %v911 = vunpack.c.h.b16 %v757
      %v912 = vunpack.c.l.b16 %v758
      %v913 = vunpack.c.h.b16 %v758
      %v914 = vunpack.c.l.b16 %v759
      %v915 = vunpack.c.h.b16 %v759
      %v916 = vunpack.c.l.b16 %v760
      %v917 = vunpack.c.h.b16 %v760
      %v918 = vunpack.c.l.b16 %v761
      %v919 = vunpack.c.h.b16 %v761
      %v920 = vunpack.c.l.b16 %v762
      %v921 = vunpack.c.h.b16 %v762
      %v922 = vunpack.c.l.b16 %v763
      %v923 = vunpack.c.h.b16 %v763
      %v924 = vunpack.c.l.b16 %v764
      %v925 = vunpack.c.h.b16 %v764
      %v926 = vunpack.c.l.b16 %v765
      %v927 = vunpack.c.h.b16 %v765
      %v928 = vunpack.c.l.b16 %v766
      %v929 = vunpack.c.h.b16 %v766
      %v930 = vunpack.c.l.b16 %v767
      %v931 = vunpack.c.h.b16 %v767
      %v932 = vunpack.c.l.b16 %v768
      %v933 = vunpack.c.h.b16 %v768
      %v934 = vunpack.c.l.b16 %v769
      %v935 = vunpack.c.h.b16 %v769
      %v936 = vunpack.c.l.b16 %v770
      %v937 = vunpack.c.h.b16 %v770
      %v938 = vunpack.c.l.b16 %v771
      %v939 = vunpack.c.h.b16 %v771
      %v940 = vunpack.c.l.b16 %v772
      %v941 = vunpack.c.h.b16 %v772
      %v942 = vunpack.c.l.b16 %v773
      %v943 = vunpack.c.h.b16 %v773
      %v944 = vunpack.c.l.b16 %v774
      %v945 = vunpack.c.h.b16 %v774
      %v946 = vunpack.c.l.b16 %v775
      %v947 = vunpack.c.h.b16 %v775
      %v948 = vunpack.c.l.b16 %v776
      %v949 = vunpack.c.h.b16 %v776
      %v950 = vunpack.c.l.b16 %v777
      %v951 = vunpack.c.h.b16 %v777
      %v952 = vunpack.c.l.b16 %v778
      %v953 = vunpack.c.h.b16 %v778
      %v954 = vunpack.c.l.b16 %v779
      %v955 = vunpack.c.h.b16 %v779
      %v956 = vunpack.c.l.b16 %v780
      %v957 = vunpack.c.h.b16 %v780
      %v958 = vunpack.c.l.b16 %v781
      %v959 = vunpack.c.h.b16 %v781
      %v960 = vunpack.c.l.b16 %v782
      %v961 = vunpack.c.h.b16 %v782
      %v962 = vunpack.c.l.b16 %v783
      %v963 = vunpack.c.h.b16 %v783
      %v964 = vunpack.c.l.b16 %v784
      %v965 = vunpack.c.h.b16 %v784
      %v966 = vunpack.c.l.b16 %v785
      %v967 = vunpack.c.h.b16 %v785
      %v968 = vunpack.c.l.b16 %v786
      %v969 = vunpack.c.h.b16 %v786
      %v970 = vunpack.c.l.b16 %v787
      %v971 = vunpack.c.h.b16 %v787
      %v972 = vunpack.c.l.b16 %v788
      %v973 = vunpack.c.h.b16 %v788
      %v974 = vunpack.c.l.b16 %v789
      %v975 = vunpack.c.h.b16 %v789
      %v976 = vunpack.c.l.b16 %v790
      %v977 = vunpack.c.h.b16 %v790
      %v978 = vunpack.c.l.b16 %v791
      %v979 = vunpack.c.h.b16 %v791
      %v980 = vunpack.c.l.b16 %v792
      %v981 = vunpack.c.h.b16 %v792
      %v982 = vunpack.c.l.b16 %v793
      %v983 = vunpack.c.h.b16 %v793
      %v984 = vunpack.c.l.b16 %v794
      %v985 = vunpack.c.h.b16 %v794
      %v986 = vunpack.c.l.b16 %v795
      %v987 = vunpack.c.h.b16 %v795
      %v988 = vunpack.c.l.b16 %v796
      %v989 = vunpack.c.h.b16 %v796
      %v990 = vunpack.c.l.b16 %v797
      %v991 = vunpack.c.h.b16 %v797
      %v992 = vunpack.c.l.b16 %v798
      %v993 = vunpack.c.h.b16 %v798
      %v994 = vunpack.c.l.b16 %v799
      %v995 = vunpack.c.h.b16 %v799
      %v996 = vunpack.c.l.b16 %v800
      %v997 = vunpack.c.h.b16 %v800
      %v998 = vunpack.c.l.b16 %v801
      %v999 = vunpack.c.h.b16 %v801
      %v1000 = vunpack.c.l.b16 %v802
      %v1001 = vunpack.c.h.b16 %v802
      %v1002 = vunpack.c.l.b16 %v803
      %v1003 = vunpack.c.h.b16 %v803
      %v1004 = vunpack.c.l.b16 %v804
      %v1005 = vunpack.c.h.b16 %v804
      %v1006 = vunpack.c.l.b16 %v805
      %v1007 = vunpack.c.h.b16 %v805
      %v1008 = vunpack.c.l.b16 %v806
      %v1009 = vunpack.c.h.b16 %v806
      %v1010 = vunpack.c.l.b16 %v807
      %v1011 = vunpack.c.h.b16 %v807
      %v1012 = vunpack.c.l.b16 %v808
      %v1013 = vunpack.c.h.b16 %v808
      %v1014 = vunpack.c.l.b16 %v809
      %v1015 = vunpack.c.h.b16 %v809
      %v1016 = vunpack.c.l.b16 %v810
      %v1017 = vunpack.c.h.b16 %v810
      %v1018 = vunpack.c.l.b16 %v811
      %v1019 = vunpack.c.h.b16 %v811
      %v1020 = vunpack.c.l.b16 %v812
      %v1021 = vunpack.c.h.b16 %v812
      %v1022 = vunpack.c.l.b16 %v813
      %v1023 = vunpack.c.h.b16 %v813
      %v1024 = vunpack.c.l.b16 %v814
      %v1025 = vunpack.c.h.b16 %v814
      %v1026 = vunpack.c.l.b16 %v815
      %v1027 = vunpack.c.h.b16 %v815
      %v1028 = vunpack.c.l.b16 %v816
      %v1029 = vunpack.c.h.b16 %v816
      %v1030 = vpack.c.b16 %v906, %v902
      %v1031 = vpack.c.b16 %v907, %v903
      %v1032 = vpack.c.b16 %v908, %v904
      %v1033 = vpack.c.b16 %v909, %v905
      %v1034 = vpack.c.b16 %v914, %v910
      %v1035 = vpack.c.b16 %v915, %v911
      %v1036 = vpack.c.b16 %v916, %v912
      %v1037 = vpack.c.b16 %v917, %v913
      %v1038 = vpack.c.b16 %v922, %v918
      %v1039 = vpack.c.b16 %v923, %v919
      %v1040 = vpack.c.b16 %v924, %v920
      %v1041 = vpack.c.b16 %v925, %v921
      %v1042 = vpack.c.b16 %v930, %v926
      %v1043 = vpack.c.b16 %v931, %v927
      %v1044 = vpack.c.b16 %v932, %v928
      %v1045 = vpack.c.b16 %v933, %v929
      %v1046 = vpack.c.b16 %v938, %v934
      %v1047 = vpack.c.b16 %v939, %v935
      %v1048 = vpack.c.b16 %v940, %v936
      %v1049 = vpack.c.b16 %v941, %v937
      %v1050 = vpack.c.b16 %v946, %v942
      %v1051 = vpack.c.b16 %v947, %v943
      %v1052 = vpack.c.b16 %v948, %v944
      %v1053 = vpack.c.b16 %v949, %v945
      %v1054 = vpack.c.b16 %v954, %v950
      %v1055 = vpack.c.b16 %v955, %v951
      %v1056 = vpack.c.b16 %v956, %v952
      %v1057 = vpack.c.b16 %v957, %v953
      %v1058 = vpack.c.b16 %v962, %v958
      %v1059 = vpack.c.b16 %v963, %v959
      %v1060 = vpack.c.b16 %v964, %v960
      %v1061 = vpack.c.b16 %v965, %v961
      %v1062 = vpack.c.b16 %v970, %v966
      %v1063 = vpack.c.b16 %v971, %v967
      %v1064 = vpack.c.b16 %v972, %v968
      %v1065 = vpack.c.b16 %v973, %v969
      %v1066 = vpack.c.b16 %v978, %v974
      %v1067 = vpack.c.b16 %v979, %v975
      %v1068 = vpack.c.b16 %v980, %v976
      %v1069 = vpack.c.b16 %v981, %v977
      %v1070 = vpack.c.b16 %v986, %v982
      %v1071 = vpack.c.b16 %v987, %v983
      %v1072 = vpack.c.b16 %v988, %v984
      %v1073 = vpack.c.b16 %v989, %v985
      %v1074 = vpack.c.b16 %v994, %v990
      %v1075 = vpack.c.b16 %v995, %v991
      %v1076 = vpack.c.b16 %v996, %v992
      %v1077 = vpack.c.b16 %v997, %v993
      %v1078 = vpack.c.b16 %v1002, %v998
      %v1079 = vpack.c.b16 %v1003, %v999
      %v1080 = vpack.c.b16 %v1004, %v1000
      %v1081 = vpack.c.b16 %v1005, %v1001
      %v1082 = vpack.c.b16 %v1010, %v1006
      %v1083 = vpack.c.b16 %v1011, %v1007
      %v1084 = vpack.c.b16 %v1012, %v1008
      %v1085 = vpack.c.b16 %v1013, %v1009
      %v1086 = vpack.c.b16 %v1018, %v1014
      %v1087 = vpack.c.b16 %v1019, %v1015
      %v1088 = vpack.c.b16 %v1020, %v1016
      %v1089 = vpack.c.b16 %v1021, %v1017
      %v1090 = vpack.c.b16 %v1026, %v1022
      %v1091 = vpack.c.b16 %v1027, %v1023
      %v1092 = vpack.c.b16 %v1028, %v1024
      %v1093 = vpack.c.b16 %v1029, %v1025
      %1158 = vmatprep.subr.bf16.mxu0 %v1059
      %1159 = vmatpush1.bf16.msra.mxu0 %v1058
      %1160 = vmatprep.subr.bf16.mxu0 %v1055
      %1161 = vmatpush1.bf16.msra.mxu0 %v1054
      %1162 = vmatprep.subr.bf16.mxu0 %v1051
      %1163 = vmatpush1.bf16.msra.mxu0 %v1050
      %1164 = vmatprep.subr.bf16.mxu0 %v1047
      %1165 = vmatpush1.bf16.msra.mxu0 %v1046
      %1166 = vmatprep.subr.bf16.mxu0 %v1043
      %1167 = vmatpush1.bf16.msra.mxu0 %v1042
      %1168 = vmatprep.subr.bf16.mxu0 %v1039
      %1169 = vmatpush1.bf16.msra.mxu0 %v1038
      %1170 = vmatprep.subr.bf16.mxu0 %v1035
      %1171 = vmatpush1.bf16.msra.mxu0 %v1034
      %1172 = vmatprep.subr.bf16.mxu0 %v1031
      %1173 = vmatpush1.bf16.msra.mxu0 %v1030
      %1174 = vmatprep.subr.bf16.mxu0 %v1091
      %1175 = vmatpush2.bf16.msra.mxu0 %v1090
      %1176 = vmatprep.subr.bf16.mxu0 %v1087
      %1177 = vmatpush2.bf16.msra.mxu0 %v1086
      %1178 = vmatprep.subr.bf16.mxu0 %v1083
      %1179 = vmatpush2.bf16.msra.mxu0 %v1082
      %1180 = vmatprep.subr.bf16.mxu0 %v1079
      %1181 = vmatpush2.bf16.msra.mxu0 %v1078
      %1182 = vmatprep.subr.bf16.mxu0 %v1075
      %1183 = vmatpush2.bf16.msra.mxu0 %v1074
      %1184 = vmatprep.subr.bf16.mxu0 %v1071
      %1185 = vmatpush2.bf16.msra.mxu0 %v1070
      %1186 = vmatprep.subr.bf16.mxu0 %v1067
      %1187 = vmatpush2.bf16.msra.mxu0 %v1066
      %1188 = vmatprep.subr.bf16.mxu0 %v1063
      %1189 = vmatpush2.bf16.msra.mxu0 %v1062
      %1190 = vmatprep.mubr.bf16.mxu0 %v835
      %1191 = vmatmul.mubr.bf16.gmra.mxu0 %v828
      %v1192 = vpop.f32.mrf.mxu0
      %v1193 = vadd.f32 0.0, %v1192
      %v1194 = vpop.f32.mrf.mxu0
      %v1195 = vadd.f32 0.0, %v1194
      %v1196 = vpop.f32.mrf.mxu0
      %v1197 = vpop.f32.mrf.mxu0
      %1198 = vdwg.mxu0
      %1199 = vmatprep.subr.bf16.mxu0 %v1061
      %1200 = vmatpush1.bf16.msra.mxu0 %v1060
      %1201 = vmatprep.subr.bf16.mxu0 %v1057
      %1202 = vmatpush1.bf16.msra.mxu0 %v1056
      %1203 = vmatprep.subr.bf16.mxu0 %v1053
      %1204 = vmatpush1.bf16.msra.mxu0 %v1052
      %1205 = vmatprep.subr.bf16.mxu0 %v1049
      %1206 = vmatpush1.bf16.msra.mxu0 %v1048
      %1207 = vmatprep.subr.bf16.mxu0 %v1045
      %1208 = vmatpush1.bf16.msra.mxu0 %v1044
      %1209 = vmatprep.subr.bf16.mxu0 %v1041
      %1210 = vmatpush1.bf16.msra.mxu0 %v1040
      %1211 = vmatprep.subr.bf16.mxu0 %v1037
      %1212 = vmatpush1.bf16.msra.mxu0 %v1036
      %1213 = vmatprep.subr.bf16.mxu0 %v1033
      %1214 = vmatpush1.bf16.msra.mxu0 %v1032
      %1215 = vmatprep.subr.bf16.mxu0 %v1093
      %1216 = vmatpush2.bf16.msra.mxu0 %v1092
      %1217 = vmatprep.subr.bf16.mxu0 %v1089
      %1218 = vmatpush2.bf16.msra.mxu0 %v1088
      %1219 = vmatprep.subr.bf16.mxu0 %v1085
      %1220 = vmatpush2.bf16.msra.mxu0 %v1084
      %1221 = vmatprep.subr.bf16.mxu0 %v1081
      %1222 = vmatpush2.bf16.msra.mxu0 %v1080
      %1223 = vmatprep.subr.bf16.mxu0 %v1077
      %1224 = vmatpush2.bf16.msra.mxu0 %v1076
      %1225 = vmatprep.subr.bf16.mxu0 %v1073
      %1226 = vmatpush2.bf16.msra.mxu0 %v1072
      %1227 = vmatprep.subr.bf16.mxu0 %v1069
      %1228 = vmatpush2.bf16.msra.mxu0 %v1068
      %1229 = vmatprep.subr.bf16.mxu0 %v1065
      %1230 = vmatpush2.bf16.msra.mxu0 %v1064
      %1231 = vmatprep.mubr.bf16.mxu0 %v835
      %1232 = vmatmul.mubr.bf16.gmra.mxu0 %v828
      %v1233 = vpop.f32.mrf.mxu0
      %v1234 = vadd.f32 0.0, %v1233
      %v1235 = vpop.f32.mrf.mxu0
      %v1236 = vadd.f32 0.0, %v1235
      %v1237 = vpop.f32.mrf.mxu0
      %v1238 = vpop.f32.mrf.mxu0
      %1239 = vdwg.mxu0
      %v1240 = vadd.f32 %v747, %v1193
      %v1241 = vadd.f32 %v748, %v1195
      %v1242 = vadd.f32 %v749, %v1234
      %v1243 = vadd.f32 %v750, %v1236
      %v1244 = vld [vmem:[%s245] sm:$0x66]
      %s1245 = scalar_lea.vmem %s1, 1024
      %v1246 = vld [vmem:[%s1245] sm:$0xff]
      %v1247 = vld [vmem:[%s1245 + $0x8] sm:$0xff]
      %v1248 = vld [vmem:[%s1245 + $0x10] sm:$0xff]
      %v1249 = vld [vmem:[%s1245 + $0x18] sm:$0xff]
      %v1250 = vld [vmem:[%s1245 + $0x20] sm:$0xff]
      %v1251 = vld [vmem:[%s1245 + $0x28] sm:$0xff]
      %v1252 = vld [vmem:[%s1245 + $0x30] sm:$0xff]
      %v1253 = vld [vmem:[%s1245 + $0x38] sm:$0xff]
      %v1254 = vld [vmem:[%s1245 + $0x40] sm:$0xff]
      %v1255 = vld [vmem:[%s1245 + $0x48] sm:$0xff]
      %v1256 = vld [vmem:[%s1245 + $0x50] sm:$0xff]
      %v1257 = vld [vmem:[%s1245 + $0x58] sm:$0xff]
      %v1258 = vld [vmem:[%s1245 + $0x60] sm:$0xff]
      %v1259 = vld [vmem:[%s1245 + $0x68] sm:$0xff]
      %v1260 = vld [vmem:[%s1245 + $0x70] sm:$0xff]
      %v1261 = vld [vmem:[%s1245 + $0x78] sm:$0xff]
      %v1262 = vld [vmem:[%s1245 + $0x80] sm:$0xff]
      %v1263 = vld [vmem:[%s1245 + $0x88] sm:$0xff]
      %v1264 = vld [vmem:[%s1245 + $0x90] sm:$0xff]
      %v1265 = vld [vmem:[%s1245 + $0x98] sm:$0xff]
      %v1266 = vld [vmem:[%s1245 + $0xa0] sm:$0xff]
      %v1267 = vld [vmem:[%s1245 + $0xa8] sm:$0xff]
      %v1268 = vld [vmem:[%s1245 + $0xb0] sm:$0xff]
      %v1269 = vld [vmem:[%s1245 + $0xb8] sm:$0xff]
      %v1270 = vld [vmem:[%s1245 + $0xc0] sm:$0xff]
      %v1271 = vld [vmem:[%s1245 + $0xc8] sm:$0xff]
      %v1272 = vld [vmem:[%s1245 + $0xd0] sm:$0xff]
      %v1273 = vld [vmem:[%s1245 + $0xd8] sm:$0xff]
      %v1274 = vld [vmem:[%s1245 + $0xe0] sm:$0xff]
      %v1275 = vld [vmem:[%s1245 + $0xe8] sm:$0xff]
      %v1276 = vld [vmem:[%s1245 + $0xf0] sm:$0xff]
      %v1277 = vld [vmem:[%s1245 + $0xf8] sm:$0xff]
      %v1278 = vld [vmem:[%s1245 + $0x100] sm:$0xff]
      %v1279 = vld [vmem:[%s1245 + $0x108] sm:$0xff]
      %v1280 = vld [vmem:[%s1245 + $0x110] sm:$0xff]
      %v1281 = vld [vmem:[%s1245 + $0x118] sm:$0xff]
      %v1282 = vld [vmem:[%s1245 + $0x120] sm:$0xff]
      %v1283 = vld [vmem:[%s1245 + $0x128] sm:$0xff]
      %v1284 = vld [vmem:[%s1245 + $0x130] sm:$0xff]
      %v1285 = vld [vmem:[%s1245 + $0x138] sm:$0xff]
      %v1286 = vld [vmem:[%s1245 + $0x140] sm:$0xff]
      %v1287 = vld [vmem:[%s1245 + $0x148] sm:$0xff]
      %v1288 = vld [vmem:[%s1245 + $0x150] sm:$0xff]
      %v1289 = vld [vmem:[%s1245 + $0x158] sm:$0xff]
      %v1290 = vld [vmem:[%s1245 + $0x160] sm:$0xff]
      %v1291 = vld [vmem:[%s1245 + $0x168] sm:$0xff]
      %v1292 = vld [vmem:[%s1245 + $0x170] sm:$0xff]
      %v1293 = vld [vmem:[%s1245 + $0x178] sm:$0xff]
      %v1294 = vld [vmem:[%s1245 + $0x180] sm:$0xff]
      %v1295 = vld [vmem:[%s1245 + $0x188] sm:$0xff]
      %v1296 = vld [vmem:[%s1245 + $0x190] sm:$0xff]
      %v1297 = vld [vmem:[%s1245 + $0x198] sm:$0xff]
      %v1298 = vld [vmem:[%s1245 + $0x1a0] sm:$0xff]
      %v1299 = vld [vmem:[%s1245 + $0x1a8] sm:$0xff]
      %v1300 = vld [vmem:[%s1245 + $0x1b0] sm:$0xff]
      %v1301 = vld [vmem:[%s1245 + $0x1b8] sm:$0xff]
      %v1302 = vld [vmem:[%s1245 + $0x1c0] sm:$0xff]
      %v1303 = vld [vmem:[%s1245 + $0x1c8] sm:$0xff]
      %v1304 = vld [vmem:[%s1245 + $0x1d0] sm:$0xff]
      %v1305 = vld [vmem:[%s1245 + $0x1d8] sm:$0xff]
      %v1306 = vld [vmem:[%s1245 + $0x1e0] sm:$0xff]
      %v1307 = vld [vmem:[%s1245 + $0x1e8] sm:$0xff]
      %v1308 = vld [vmem:[%s1245 + $0x1f0] sm:$0xff]
      %v1309 = vld [vmem:[%s1245 + $0x1f8] sm:$0xff]
      %v1311 = vunpack.c.l.b16 %v1244
      %v1312 = vunpack.c.h.b16 %v1244
      %v1313 = vpack.c.b16 %v1311, %v1311
      %v1314 = vpack.c.b16 %v1312, %v1312
      %v1315 = vrot.slane %v1313, 1
      %v1316 = vrot.slane %v1314, 1
      %v1383 = vunpack.c.l.b16 %v1246
      %v1384 = vunpack.c.h.b16 %v1246
      %v1385 = vunpack.c.l.b16 %v1247
      %v1386 = vunpack.c.h.b16 %v1247
      %v1387 = vunpack.c.l.b16 %v1248
      %v1388 = vunpack.c.h.b16 %v1248
      %v1389 = vunpack.c.l.b16 %v1249
      %v1390 = vunpack.c.h.b16 %v1249
      %v1391 = vunpack.c.l.b16 %v1250
      %v1392 = vunpack.c.h.b16 %v1250
      %v1393 = vunpack.c.l.b16 %v1251
      %v1394 = vunpack.c.h.b16 %v1251
      %v1395 = vunpack.c.l.b16 %v1252
      %v1396 = vunpack.c.h.b16 %v1252
      %v1397 = vunpack.c.l.b16 %v1253
      %v1398 = vunpack.c.h.b16 %v1253
      %v1399 = vunpack.c.l.b16 %v1254
      %v1400 = vunpack.c.h.b16 %v1254
      %v1401 = vunpack.c.l.b16 %v1255
      %v1402 = vunpack.c.h.b16 %v1255
      %v1403 = vunpack.c.l.b16 %v1256
      %v1404 = vunpack.c.h.b16 %v1256
      %v1405 = vunpack.c.l.b16 %v1257
      %v1406 = vunpack.c.h.b16 %v1257
      %v1407 = vunpack.c.l.b16 %v1258
      %v1408 = vunpack.c.h.b16 %v1258
      %v1409 = vunpack.c.l.b16 %v1259
      %v1410 = vunpack.c.h.b16 %v1259
      %v1411 = vunpack.c.l.b16 %v1260
      %v1412 = vunpack.c.h.b16 %v1260
      %v1413 = vunpack.c.l.b16 %v1261
      %v1414 = vunpack.c.h.b16 %v1261
      %v1415 = vunpack.c.l.b16 %v1262
      %v1416 = vunpack.c.h.b16 %v1262
      %v1417 = vunpack.c.l.b16 %v1263
      %v1418 = vunpack.c.h.b16 %v1263
      %v1419 = vunpack.c.l.b16 %v1264
      %v1420 = vunpack.c.h.b16 %v1264
      %v1421 = vunpack.c.l.b16 %v1265
      %v1422 = vunpack.c.h.b16 %v1265
      %v1423 = vunpack.c.l.b16 %v1266
      %v1424 = vunpack.c.h.b16 %v1266
      %v1425 = vunpack.c.l.b16 %v1267
      %v1426 = vunpack.c.h.b16 %v1267
      %v1427 = vunpack.c.l.b16 %v1268
      %v1428 = vunpack.c.h.b16 %v1268
      %v1429 = vunpack.c.l.b16 %v1269
      %v1430 = vunpack.c.h.b16 %v1269
      %v1431 = vunpack.c.l.b16 %v1270
      %v1432 = vunpack.c.h.b16 %v1270
      %v1433 = vunpack.c.l.b16 %v1271
      %v1434 = vunpack.c.h.b16 %v1271
      %v1435 = vunpack.c.l.b16 %v1272
      %v1436 = vunpack.c.h.b16 %v1272
      %v1437 = vunpack.c.l.b16 %v1273
      %v1438 = vunpack.c.h.b16 %v1273
      %v1439 = vunpack.c.l.b16 %v1274
      %v1440 = vunpack.c.h.b16 %v1274
      %v1441 = vunpack.c.l.b16 %v1275
      %v1442 = vunpack.c.h.b16 %v1275
      %v1443 = vunpack.c.l.b16 %v1276
      %v1444 = vunpack.c.h.b16 %v1276
      %v1445 = vunpack.c.l.b16 %v1277
      %v1446 = vunpack.c.h.b16 %v1277
      %v1447 = vunpack.c.l.b16 %v1278
      %v1448 = vunpack.c.h.b16 %v1278
      %v1449 = vunpack.c.l.b16 %v1279
      %v1450 = vunpack.c.h.b16 %v1279
      %v1451 = vunpack.c.l.b16 %v1280
      %v1452 = vunpack.c.h.b16 %v1280
      %v1453 = vunpack.c.l.b16 %v1281
      %v1454 = vunpack.c.h.b16 %v1281
      %v1455 = vunpack.c.l.b16 %v1282
      %v1456 = vunpack.c.h.b16 %v1282
      %v1457 = vunpack.c.l.b16 %v1283
      %v1458 = vunpack.c.h.b16 %v1283
      %v1459 = vunpack.c.l.b16 %v1284
      %v1460 = vunpack.c.h.b16 %v1284
      %v1461 = vunpack.c.l.b16 %v1285
      %v1462 = vunpack.c.h.b16 %v1285
      %v1463 = vunpack.c.l.b16 %v1286
      %v1464 = vunpack.c.h.b16 %v1286
      %v1465 = vunpack.c.l.b16 %v1287
      %v1466 = vunpack.c.h.b16 %v1287
      %v1467 = vunpack.c.l.b16 %v1288
      %v1468 = vunpack.c.h.b16 %v1288
      %v1469 = vunpack.c.l.b16 %v1289
      %v1470 = vunpack.c.h.b16 %v1289
      %v1471 = vunpack.c.l.b16 %v1290
      %v1472 = vunpack.c.h.b16 %v1290
      %v1473 = vunpack.c.l.b16 %v1291
      %v1474 = vunpack.c.h.b16 %v1291
      %v1475 = vunpack.c.l.b16 %v1292
      %v1476 = vunpack.c.h.b16 %v1292
      %v1477 = vunpack.c.l.b16 %v1293
      %v1478 = vunpack.c.h.b16 %v1293
      %v1479 = vunpack.c.l.b16 %v1294
      %v1480 = vunpack.c.h.b16 %v1294
      %v1481 = vunpack.c.l.b16 %v1295
      %v1482 = vunpack.c.h.b16 %v1295
      %v1483 = vunpack.c.l.b16 %v1296
      %v1484 = vunpack.c.h.b16 %v1296
      %v1485 = vunpack.c.l.b16 %v1297
      %v1486 = vunpack.c.h.b16 %v1297
      %v1487 = vunpack.c.l.b16 %v1298
      %v1488 = vunpack.c.h.b16 %v1298
      %v1489 = vunpack.c.l.b16 %v1299
      %v1490 = vunpack.c.h.b16 %v1299
      %v1491 = vunpack.c.l.b16 %v1300
      %v1492 = vunpack.c.h.b16 %v1300
      %v1493 = vunpack.c.l.b16 %v1301
      %v1494 = vunpack.c.h.b16 %v1301
      %v1495 = vunpack.c.l.b16 %v1302
      %v1496 = vunpack.c.h.b16 %v1302
      %v1497 = vunpack.c.l.b16 %v1303
      %v1498 = vunpack.c.h.b16 %v1303
      %v1499 = vunpack.c.l.b16 %v1304
      %v1500 = vunpack.c.h.b16 %v1304
      %v1501 = vunpack.c.l.b16 %v1305
      %v1502 = vunpack.c.h.b16 %v1305
      %v1503 = vunpack.c.l.b16 %v1306
      %v1504 = vunpack.c.h.b16 %v1306
      %v1505 = vunpack.c.l.b16 %v1307
      %v1506 = vunpack.c.h.b16 %v1307
      %v1507 = vunpack.c.l.b16 %v1308
      %v1508 = vunpack.c.h.b16 %v1308
      %v1509 = vunpack.c.l.b16 %v1309
      %v1510 = vunpack.c.h.b16 %v1309
      %v1511 = vpack.c.b16 %v1387, %v1383
      %v1512 = vpack.c.b16 %v1388, %v1384
      %v1513 = vpack.c.b16 %v1389, %v1385
      %v1514 = vpack.c.b16 %v1390, %v1386
      %v1515 = vpack.c.b16 %v1395, %v1391
      %v1516 = vpack.c.b16 %v1396, %v1392
      %v1517 = vpack.c.b16 %v1397, %v1393
      %v1518 = vpack.c.b16 %v1398, %v1394
      %v1519 = vpack.c.b16 %v1403, %v1399
      %v1520 = vpack.c.b16 %v1404, %v1400
      %v1521 = vpack.c.b16 %v1405, %v1401
      %v1522 = vpack.c.b16 %v1406, %v1402
      %v1523 = vpack.c.b16 %v1411, %v1407
      %v1524 = vpack.c.b16 %v1412, %v1408
      %v1525 = vpack.c.b16 %v1413, %v1409
      %v1526 = vpack.c.b16 %v1414, %v1410
      %v1527 = vpack.c.b16 %v1419, %v1415
      %v1528 = vpack.c.b16 %v1420, %v1416
      %v1529 = vpack.c.b16 %v1421, %v1417
      %v1530 = vpack.c.b16 %v1422, %v1418
      %v1531 = vpack.c.b16 %v1427, %v1423
      %v1532 = vpack.c.b16 %v1428, %v1424
      %v1533 = vpack.c.b16 %v1429, %v1425
      %v1534 = vpack.c.b16 %v1430, %v1426
      %v1535 = vpack.c.b16 %v1435, %v1431
      %v1536 = vpack.c.b16 %v1436, %v1432
      %v1537 = vpack.c.b16 %v1437, %v1433
      %v1538 = vpack.c.b16 %v1438, %v1434
      %v1539 = vpack.c.b16 %v1443, %v1439
      %v1540 = vpack.c.b16 %v1444, %v1440
      %v1541 = vpack.c.b16 %v1445, %v1441
      %v1542 = vpack.c.b16 %v1446, %v1442
      %v1543 = vpack.c.b16 %v1451, %v1447
      %v1544 = vpack.c.b16 %v1452, %v1448
      %v1545 = vpack.c.b16 %v1453, %v1449
      %v1546 = vpack.c.b16 %v1454, %v1450
      %v1547 = vpack.c.b16 %v1459, %v1455
      %v1548 = vpack.c.b16 %v1460, %v1456
      %v1549 = vpack.c.b16 %v1461, %v1457
      %v1550 = vpack.c.b16 %v1462, %v1458
      %v1551 = vpack.c.b16 %v1467, %v1463
      %v1552 = vpack.c.b16 %v1468, %v1464
      %v1553 = vpack.c.b16 %v1469, %v1465
      %v1554 = vpack.c.b16 %v1470, %v1466
      %v1555 = vpack.c.b16 %v1475, %v1471
      %v1556 = vpack.c.b16 %v1476, %v1472
      %v1557 = vpack.c.b16 %v1477, %v1473
      %v1558 = vpack.c.b16 %v1478, %v1474
      %v1559 = vpack.c.b16 %v1483, %v1479
      %v1560 = vpack.c.b16 %v1484, %v1480
      %v1561 = vpack.c.b16 %v1485, %v1481
      %v1562 = vpack.c.b16 %v1486, %v1482
      %v1563 = vpack.c.b16 %v1491, %v1487
      %v1564 = vpack.c.b16 %v1492, %v1488
      %v1565 = vpack.c.b16 %v1493, %v1489
      %v1566 = vpack.c.b16 %v1494, %v1490
      %v1567 = vpack.c.b16 %v1499, %v1495
      %v1568 = vpack.c.b16 %v1500, %v1496
      %v1569 = vpack.c.b16 %v1501, %v1497
      %v1570 = vpack.c.b16 %v1502, %v1498
      %v1571 = vpack.c.b16 %v1507, %v1503
      %v1572 = vpack.c.b16 %v1508, %v1504
      %v1573 = vpack.c.b16 %v1509, %v1505
      %v1574 = vpack.c.b16 %v1510, %v1506
      %1639 = vmatprep.subr.bf16.mxu0 %v1540
      %1640 = vmatpush1.bf16.msra.mxu0 %v1539
      %1641 = vmatprep.subr.bf16.mxu0 %v1536
      %1642 = vmatpush1.bf16.msra.mxu0 %v1535
      %1643 = vmatprep.subr.bf16.mxu0 %v1532
      %1644 = vmatpush1.bf16.msra.mxu0 %v1531
      %1645 = vmatprep.subr.bf16.mxu0 %v1528
      %1646 = vmatpush1.bf16.msra.mxu0 %v1527
      %1647 = vmatprep.subr.bf16.mxu0 %v1524
      %1648 = vmatpush1.bf16.msra.mxu0 %v1523
      %1649 = vmatprep.subr.bf16.mxu0 %v1520
      %1650 = vmatpush1.bf16.msra.mxu0 %v1519
      %1651 = vmatprep.subr.bf16.mxu0 %v1516
      %1652 = vmatpush1.bf16.msra.mxu0 %v1515
      %1653 = vmatprep.subr.bf16.mxu0 %v1512
      %1654 = vmatpush1.bf16.msra.mxu0 %v1511
      %1655 = vmatprep.subr.bf16.mxu0 %v1572
      %1656 = vmatpush2.bf16.msra.mxu0 %v1571
      %1657 = vmatprep.subr.bf16.mxu0 %v1568
      %1658 = vmatpush2.bf16.msra.mxu0 %v1567
      %1659 = vmatprep.subr.bf16.mxu0 %v1564
      %1660 = vmatpush2.bf16.msra.mxu0 %v1563
      %1661 = vmatprep.subr.bf16.mxu0 %v1560
      %1662 = vmatpush2.bf16.msra.mxu0 %v1559
      %1663 = vmatprep.subr.bf16.mxu0 %v1556
      %1664 = vmatpush2.bf16.msra.mxu0 %v1555
      %1665 = vmatprep.subr.bf16.mxu0 %v1552
      %1666 = vmatpush2.bf16.msra.mxu0 %v1551
      %1667 = vmatprep.subr.bf16.mxu0 %v1548
      %1668 = vmatpush2.bf16.msra.mxu0 %v1547
      %1669 = vmatprep.subr.bf16.mxu0 %v1544
      %1670 = vmatpush2.bf16.msra.mxu0 %v1543
      %1671 = vmatprep.mubr.bf16.mxu0 %v1316
      %1672 = vmatmul.mubr.bf16.gmra.mxu0 %v1315
      %v1673 = vpop.f32.mrf.mxu0
      %v1674 = vadd.f32 0.0, %v1673
      %v1675 = vpop.f32.mrf.mxu0
      %v1676 = vadd.f32 0.0, %v1675
      %v1677 = vpop.f32.mrf.mxu0
      %v1678 = vpop.f32.mrf.mxu0
      %1679 = vdwg.mxu0
      %1680 = vmatprep.subr.bf16.mxu0 %v1542
      %1681 = vmatpush1.bf16.msra.mxu0 %v1541
      %1682 = vmatprep.subr.bf16.mxu0 %v1538
      %1683 = vmatpush1.bf16.msra.mxu0 %v1537
      %1684 = vmatprep.subr.bf16.mxu0 %v1534
      %1685 = vmatpush1.bf16.msra.mxu0 %v1533
      %1686 = vmatprep.subr.bf16.mxu0 %v1530
      %1687 = vmatpush1.bf16.msra.mxu0 %v1529
      %1688 = vmatprep.subr.bf16.mxu0 %v1526
      %1689 = vmatpush1.bf16.msra.mxu0 %v1525
      %1690 = vmatprep.subr.bf16.mxu0 %v1522
      %1691 = vmatpush1.bf16.msra.mxu0 %v1521
      %1692 = vmatprep.subr.bf16.mxu0 %v1518
      %1693 = vmatpush1.bf16.msra.mxu0 %v1517
      %1694 = vmatprep.subr.bf16.mxu0 %v1514
      %1695 = vmatpush1.bf16.msra.mxu0 %v1513
      %1696 = vmatprep.subr.bf16.mxu0 %v1574
      %1697 = vmatpush2.bf16.msra.mxu0 %v1573
      %1698 = vmatprep.subr.bf16.mxu0 %v1570
      %1699 = vmatpush2.bf16.msra.mxu0 %v1569
      %1700 = vmatprep.subr.bf16.mxu0 %v1566
      %1701 = vmatpush2.bf16.msra.mxu0 %v1565
      %1702 = vmatprep.subr.bf16.mxu0 %v1562
      %1703 = vmatpush2.bf16.msra.mxu0 %v1561
      %1704 = vmatprep.subr.bf16.mxu0 %v1558
      %1705 = vmatpush2.bf16.msra.mxu0 %v1557
      %1706 = vmatprep.subr.bf16.mxu0 %v1554
      %1707 = vmatpush2.bf16.msra.mxu0 %v1553
      %1708 = vmatprep.subr.bf16.mxu0 %v1550
      %1709 = vmatpush2.bf16.msra.mxu0 %v1549
      %1710 = vmatprep.subr.bf16.mxu0 %v1546
      %1711 = vmatpush2.bf16.msra.mxu0 %v1545
      %1712 = vmatprep.mubr.bf16.mxu0 %v1316
      %1713 = vmatmul.mubr.bf16.gmra.mxu0 %v1315
      %v1714 = vpop.f32.mrf.mxu0
      %v1715 = vadd.f32 0.0, %v1714
      %v1716 = vpop.f32.mrf.mxu0
      %v1717 = vadd.f32 0.0, %v1716
      %v1718 = vpop.f32.mrf.mxu0
      %v1719 = vpop.f32.mrf.mxu0
      %1720 = vdwg.mxu0
      %v1721 = vadd.f32 %v1240, %v1674
      %v1722 = vadd.f32 %v1241, %v1676
      %v1723 = vadd.f32 %v1242, %v1715
      %v1724 = vadd.f32 %v1243, %v1717
      %1725 = vst [vmem:[#allocation2] sm:$0x11] 0
      %1726 = vst [vmem:[#allocation2 + $0x8] sm:$0x11] 0
      %v1727 = vmax.f32 %v1721, 0.0
      %v1728 = vmax.f32 %v1722, 0.0
      %v1729 = vmax.f32 %v1723, 0.0
      %v1730 = vmax.f32 %v1724, 0.0
      %v1731 = vpack.c.bf16 %v1727, %v1727
      %v1732 = vpack.c.bf16 %v1728, %v1728
      %v1733 = vpack.c.bf16 %v1729, %v1729
      %v1734 = vpack.c.bf16 %v1730, %v1730
      %v1739 = vunpack.c.l.b16 %v1731
      %v1740 = vunpack.c.l.b16 %v1732
      %v1741 = vunpack.c.l.b16 %v1733
      %v1742 = vunpack.c.l.b16 %v1734
      %v1743 = vpack.c.b16 %v1740, %v1739
      %v1744 = vpack.c.b16 %v1742, %v1741
      %v1745 = vrot.slane %v1743, 7
      %v1746 = vrot.slane %v1744, 7
      %1749 = vst [vmem:[#allocation2] sm:$0x66] %v1745
      %1750 = vst [vmem:[#allocation2 + $0x8] sm:$0x66] %v1746
      %v1751 = vld [vmem:[%s5] sm:$0x1]
      %v1753 = vlaneseq
      %v1754 = vshrl.u32 %v1753, 7
      %v1755 = vsub.s32 0, %v1754
      %v1756 = vrot.slane %v1751, %v1755
      %v1758 = vld [vmem:[#allocation2] sm:$0x77]
      %v1759 = vld [vmem:[#allocation2 + $0x8] sm:$0x77]
      %v1760 = vld [vmem:[%s3] sm:$0xf]
      %v1761 = vld [vmem:[%s3 + $0x4] sm:$0xf]
      %v1762 = vld [vmem:[%s3 + $0x8] sm:$0xf]
      %v1763 = vld [vmem:[%s3 + $0xc] sm:$0xf]
      %v1764 = vld [vmem:[%s3 + $0x10] sm:$0xf]
      %v1765 = vld [vmem:[%s3 + $0x14] sm:$0xf]
      %v1766 = vld [vmem:[%s3 + $0x18] sm:$0xf]
      %v1767 = vld [vmem:[%s3 + $0x1c] sm:$0xf]
      %v1768 = vld [vmem:[%s3 + $0x20] sm:$0xf]
      %v1769 = vld [vmem:[%s3 + $0x24] sm:$0xf]
      %v1770 = vld [vmem:[%s3 + $0x28] sm:$0xf]
      %v1771 = vld [vmem:[%s3 + $0x2c] sm:$0xf]
      %v1772 = vld [vmem:[%s3 + $0x30] sm:$0xf]
      %v1773 = vld [vmem:[%s3 + $0x34] sm:$0xf]
      %v1774 = vld [vmem:[%s3 + $0x38] sm:$0xf]
      %v1775 = vld [vmem:[%s3 + $0x3c] sm:$0xf]
      %v1776 = vld [vmem:[%s3 + $0x40] sm:$0xf]
      %v1777 = vld [vmem:[%s3 + $0x44] sm:$0xf]
      %v1778 = vld [vmem:[%s3 + $0x48] sm:$0xf]
      %v1779 = vld [vmem:[%s3 + $0x4c] sm:$0xf]
      %v1780 = vld [vmem:[%s3 + $0x50] sm:$0xf]
      %v1781 = vld [vmem:[%s3 + $0x54] sm:$0xf]
      %v1782 = vld [vmem:[%s3 + $0x58] sm:$0xf]
      %v1783 = vld [vmem:[%s3 + $0x5c] sm:$0xf]
      %v1784 = vld [vmem:[%s3 + $0x60] sm:$0xf]
      %v1785 = vld [vmem:[%s3 + $0x64] sm:$0xf]
      %v1786 = vld [vmem:[%s3 + $0x68] sm:$0xf]
      %v1787 = vld [vmem:[%s3 + $0x6c] sm:$0xf]
      %v1788 = vld [vmem:[%s3 + $0x70] sm:$0xf]
      %v1789 = vld [vmem:[%s3 + $0x74] sm:$0xf]
      %v1790 = vld [vmem:[%s3 + $0x78] sm:$0xf]
      %v1791 = vld [vmem:[%s3 + $0x7c] sm:$0xf]
      %v1792 = vld [vmem:[%s3 + $0x80] sm:$0xf]
      %v1793 = vld [vmem:[%s3 + $0x84] sm:$0xf]
      %v1794 = vld [vmem:[%s3 + $0x88] sm:$0xf]
      %v1795 = vld [vmem:[%s3 + $0x8c] sm:$0xf]
      %v1796 = vld [vmem:[%s3 + $0x90] sm:$0xf]
      %v1797 = vld [vmem:[%s3 + $0x94] sm:$0xf]
      %v1798 = vld [vmem:[%s3 + $0x98] sm:$0xf]
      %v1799 = vld [vmem:[%s3 + $0x9c] sm:$0xf]
      %v1800 = vld [vmem:[%s3 + $0xa0] sm:$0xf]
      %v1801 = vld [vmem:[%s3 + $0xa4] sm:$0xf]
      %v1802 = vld [vmem:[%s3 + $0xa8] sm:$0xf]
      %v1803 = vld [vmem:[%s3 + $0xac] sm:$0xf]
      %v1804 = vld [vmem:[%s3 + $0xb0] sm:$0xf]
      %v1805 = vld [vmem:[%s3 + $0xb4] sm:$0xf]
      %v1806 = vld [vmem:[%s3 + $0xb8] sm:$0xf]
      %v1807 = vld [vmem:[%s3 + $0xbc] sm:$0xf]
      %v1808 = vld [vmem:[%s3 + $0xc0] sm:$0xf]
      %v1809 = vld [vmem:[%s3 + $0xc4] sm:$0xf]
      %v1810 = vld [vmem:[%s3 + $0xc8] sm:$0xf]
      %v1811 = vld [vmem:[%s3 + $0xcc] sm:$0xf]
      %v1812 = vld [vmem:[%s3 + $0xd0] sm:$0xf]
      %v1813 = vld [vmem:[%s3 + $0xd4] sm:$0xf]
      %v1814 = vld [vmem:[%s3 + $0xd8] sm:$0xf]
      %v1815 = vld [vmem:[%s3 + $0xdc] sm:$0xf]
      %v1816 = vld [vmem:[%s3 + $0xe0] sm:$0xf]
      %v1817 = vld [vmem:[%s3 + $0xe4] sm:$0xf]
      %v1818 = vld [vmem:[%s3 + $0xe8] sm:$0xf]
      %v1819 = vld [vmem:[%s3 + $0xec] sm:$0xf]
      %v1820 = vld [vmem:[%s3 + $0xf0] sm:$0xf]
      %v1821 = vld [vmem:[%s3 + $0xf4] sm:$0xf]
      %v1822 = vld [vmem:[%s3 + $0xf8] sm:$0xf]
      %v1823 = vld [vmem:[%s3 + $0xfc] sm:$0xf]
      %v1826 = vunpack.c.l.b16 %v1758
      %v1827 = vunpack.c.h.b16 %v1758
      %v1828 = vunpack.c.l.b16 %v1759
      %v1829 = vunpack.c.h.b16 %v1759
      %v1830 = vpack.c.b16 %v1826, %v1826
      %v1831 = vpack.c.b16 %v1827, %v1827
      %v1832 = vpack.c.b16 %v1828, %v1828
      %v1833 = vpack.c.b16 %v1829, %v1829
      %v1835 = vshrl.u32 %v1830, 16
      %v1837 = vshll.u32 %v1830, 16
      %v1839 = vrot.slane %v1837, 1
      %v1840 = vor.u32 %v1835, %v1839
      %v1842 = vshrl.u32 %v1831, 16
      %v1844 = vshll.u32 %v1831, 16
      %v1846 = vrot.slane %v1844, 1
      %v1847 = vor.u32 %v1842, %v1846
      %v1849 = vshrl.u32 %v1832, 16
      %v1851 = vshll.u32 %v1832, 16
      %v1853 = vrot.slane %v1851, 1
      %v1854 = vor.u32 %v1849, %v1853
      %v1856 = vshrl.u32 %v1833, 16
      %v1858 = vshll.u32 %v1833, 16
      %v1860 = vrot.slane %v1858, 1
      %v1861 = vor.u32 %v1856, %v1860
      %v1930 = vunpack.c.l.b16 %v1760
      %v1931 = vunpack.c.l.b16 %v1761
      %v1932 = vunpack.c.l.b16 %v1762
      %v1933 = vunpack.c.l.b16 %v1763
      %v1934 = vunpack.c.l.b16 %v1764
      %v1935 = vunpack.c.l.b16 %v1765
      %v1936 = vunpack.c.l.b16 %v1766
      %v1937 = vunpack.c.l.b16 %v1767
      %v1938 = vunpack.c.l.b16 %v1768
      %v1939 = vunpack.c.l.b16 %v1769
      %v1940 = vunpack.c.l.b16 %v1770
      %v1941 = vunpack.c.l.b16 %v1771
      %v1942 = vunpack.c.l.b16 %v1772
      %v1943 = vunpack.c.l.b16 %v1773
      %v1944 = vunpack.c.l.b16 %v1774
      %v1945 = vunpack.c.l.b16 %v1775
      %v1946 = vunpack.c.l.b16 %v1776
      %v1947 = vunpack.c.l.b16 %v1777
      %v1948 = vunpack.c.l.b16 %v1778
      %v1949 = vunpack.c.l.b16 %v1779
      %v1950 = vunpack.c.l.b16 %v1780
      %v1951 = vunpack.c.l.b16 %v1781
      %v1952 = vunpack.c.l.b16 %v1782
      %v1953 = vunpack.c.l.b16 %v1783
      %v1954 = vunpack.c.l.b16 %v1784
      %v1955 = vunpack.c.l.b16 %v1785
      %v1956 = vunpack.c.l.b16 %v1786
      %v1957 = vunpack.c.l.b16 %v1787
      %v1958 = vunpack.c.l.b16 %v1788
      %v1959 = vunpack.c.l.b16 %v1789
      %v1960 = vunpack.c.l.b16 %v1790
      %v1961 = vunpack.c.l.b16 %v1791
      %v1962 = vunpack.c.l.b16 %v1792
      %v1963 = vunpack.c.l.b16 %v1793
      %v1964 = vunpack.c.l.b16 %v1794
      %v1965 = vunpack.c.l.b16 %v1795
      %v1966 = vunpack.c.l.b16 %v1796
      %v1967 = vunpack.c.l.b16 %v1797
      %v1968 = vunpack.c.l.b16 %v1798
      %v1969 = vunpack.c.l.b16 %v1799
      %v1970 = vunpack.c.l.b16 %v1800
      %v1971 = vunpack.c.l.b16 %v1801
      %v1972 = vunpack.c.l.b16 %v1802
      %v1973 = vunpack.c.l.b16 %v1803
      %v1974 = vunpack.c.l.b16 %v1804
      %v1975 = vunpack.c.l.b16 %v1805
      %v1976 = vunpack.c.l.b16 %v1806
      %v1977 = vunpack.c.l.b16 %v1807
      %v1978 = vunpack.c.l.b16 %v1808
      %v1979 = vunpack.c.l.b16 %v1809
      %v1980 = vunpack.c.l.b16 %v1810
      %v1981 = vunpack.c.l.b16 %v1811
      %v1982 = vunpack.c.l.b16 %v1812
      %v1983 = vunpack.c.l.b16 %v1813
      %v1984 = vunpack.c.l.b16 %v1814
      %v1985 = vunpack.c.l.b16 %v1815
      %v1986 = vunpack.c.l.b16 %v1816
      %v1987 = vunpack.c.l.b16 %v1817
      %v1988 = vunpack.c.l.b16 %v1818
      %v1989 = vunpack.c.l.b16 %v1819
      %v1990 = vunpack.c.l.b16 %v1820
      %v1991 = vunpack.c.l.b16 %v1821
      %v1992 = vunpack.c.l.b16 %v1822
      %v1993 = vunpack.c.l.b16 %v1823
      %v1994 = vpack.c.b16 %v1931, %v1930
      %v1995 = vpack.c.b16 %v1933, %v1932
      %v1996 = vpack.c.b16 %v1935, %v1934
      %v1997 = vpack.c.b16 %v1937, %v1936
      %v1998 = vpack.c.b16 %v1939, %v1938
      %v1999 = vpack.c.b16 %v1941, %v1940
      %v2000 = vpack.c.b16 %v1943, %v1942
      %v2001 = vpack.c.b16 %v1945, %v1944
      %v2002 = vpack.c.b16 %v1947, %v1946
      %v2003 = vpack.c.b16 %v1949, %v1948
      %v2004 = vpack.c.b16 %v1951, %v1950
      %v2005 = vpack.c.b16 %v1953, %v1952
      %v2006 = vpack.c.b16 %v1955, %v1954
      %v2007 = vpack.c.b16 %v1957, %v1956
      %v2008 = vpack.c.b16 %v1959, %v1958
      %v2009 = vpack.c.b16 %v1961, %v1960
      %v2010 = vpack.c.b16 %v1963, %v1962
      %v2011 = vpack.c.b16 %v1965, %v1964
      %v2012 = vpack.c.b16 %v1967, %v1966
      %v2013 = vpack.c.b16 %v1969, %v1968
      %v2014 = vpack.c.b16 %v1971, %v1970
      %v2015 = vpack.c.b16 %v1973, %v1972
      %v2016 = vpack.c.b16 %v1975, %v1974
      %v2017 = vpack.c.b16 %v1977, %v1976
      %v2018 = vpack.c.b16 %v1979, %v1978
      %v2019 = vpack.c.b16 %v1981, %v1980
      %v2020 = vpack.c.b16 %v1983, %v1982
      %v2021 = vpack.c.b16 %v1985, %v1984
      %v2022 = vpack.c.b16 %v1987, %v1986
      %v2023 = vpack.c.b16 %v1989, %v1988
      %v2024 = vpack.c.b16 %v1991, %v1990
      %v2025 = vpack.c.b16 %v1993, %v1992
      %2058 = vmatprep.subr.bf16.mxu0 0
      %2059 = vmatpush1.bf16.msra.mxu0 %v2001
      %2060 = vmatprep.subr.bf16.mxu0 0
      %2061 = vmatpush1.bf16.msra.mxu0 %v2000
      %2062 = vmatprep.subr.bf16.mxu0 0
      %2063 = vmatpush1.bf16.msra.mxu0 %v1999
      %2064 = vmatprep.subr.bf16.mxu0 0
      %2065 = vmatpush1.bf16.msra.mxu0 %v1998
      %2066 = vmatprep.subr.bf16.mxu0 0
      %2067 = vmatpush1.bf16.msra.mxu0 %v1997
      %2068 = vmatprep.subr.bf16.mxu0 0
      %2069 = vmatpush1.bf16.msra.mxu0 %v1996
      %2070 = vmatprep.subr.bf16.mxu0 0
      %2071 = vmatpush1.bf16.msra.mxu0 %v1995
      %2072 = vmatprep.subr.bf16.mxu0 0
      %2073 = vmatpush1.bf16.msra.mxu0 %v1994
      %2074 = vmatprep.subr.bf16.mxu0 0
      %2075 = vmatpush2.bf16.msra.mxu0 %v2009
      %2076 = vmatprep.subr.bf16.mxu0 0
      %2077 = vmatpush2.bf16.msra.mxu0 %v2008
      %2078 = vmatprep.subr.bf16.mxu0 0
      %2079 = vmatpush2.bf16.msra.mxu0 %v2007
      %2080 = vmatprep.subr.bf16.mxu0 0
      %2081 = vmatpush2.bf16.msra.mxu0 %v2006
      %2082 = vmatprep.subr.bf16.mxu0 0
      %2083 = vmatpush2.bf16.msra.mxu0 %v2005
      %2084 = vmatprep.subr.bf16.mxu0 0
      %2085 = vmatpush2.bf16.msra.mxu0 %v2004
      %2086 = vmatprep.subr.bf16.mxu0 0
      %2087 = vmatpush2.bf16.msra.mxu0 %v2003
      %2088 = vmatprep.subr.bf16.mxu0 0
      %2089 = vmatpush2.bf16.msra.mxu0 %v2002
      %2090 = vmatprep.mubr.bf16.mxu0 %v1847
      %2091 = vmatmul.mubr.bf16.gmra.mxu0 %v1840
      %v2092 = vpop.f32.mrf.mxu0
      %v2093 = vadd.f32 0.0, %v2092
      %v2094 = vpop.f32.mrf.mxu0
      %v2095 = vpop.f32.mrf.mxu0
      %v2096 = vpop.f32.mrf.mxu0
      %2097 = vdwg.mxu0
      %2098 = vmatprep.subr.bf16.mxu0 0
      %2099 = vmatpush1.bf16.msra.mxu0 %v2017
      %2100 = vmatprep.subr.bf16.mxu0 0
      %2101 = vmatpush1.bf16.msra.mxu0 %v2016
      %2102 = vmatprep.subr.bf16.mxu0 0
      %2103 = vmatpush1.bf16.msra.mxu0 %v2015
      %2104 = vmatprep.subr.bf16.mxu0 0
      %2105 = vmatpush1.bf16.msra.mxu0 %v2014
      %2106 = vmatprep.subr.bf16.mxu0 0
      %2107 = vmatpush1.bf16.msra.mxu0 %v2013
      %2108 = vmatprep.subr.bf16.mxu0 0
      %2109 = vmatpush1.bf16.msra.mxu0 %v2012
      %2110 = vmatprep.subr.bf16.mxu0 0
      %2111 = vmatpush1.bf16.msra.mxu0 %v2011
      %2112 = vmatprep.subr.bf16.mxu0 0
      %2113 = vmatpush1.bf16.msra.mxu0 %v2010
      %2114 = vmatprep.subr.bf16.mxu0 0
      %2115 = vmatpush2.bf16.msra.mxu0 %v2025
      %2116 = vmatprep.subr.bf16.mxu0 0
      %2117 = vmatpush2.bf16.msra.mxu0 %v2024
      %2118 = vmatprep.subr.bf16.mxu0 0
      %2119 = vmatpush2.bf16.msra.mxu0 %v2023
      %2120 = vmatprep.subr.bf16.mxu0 0
      %2121 = vmatpush2.bf16.msra.mxu0 %v2022
      %2122 = vmatprep.subr.bf16.mxu0 0
      %2123 = vmatpush2.bf16.msra.mxu0 %v2021
      %2124 = vmatprep.subr.bf16.mxu0 0
      %2125 = vmatpush2.bf16.msra.mxu0 %v2020
      %2126 = vmatprep.subr.bf16.mxu0 0
      %2127 = vmatpush2.bf16.msra.mxu0 %v2019
      %2128 = vmatprep.subr.bf16.mxu0 0
      %2129 = vmatpush2.bf16.msra.mxu0 %v2018
      %2130 = vmatprep.mubr.bf16.mxu0 %v1861
      %2131 = vmatmul.mubr.bf16.gmra.mxu0 %v1854
      %v2132 = vpop.f32.mrf.mxu0
      %v2133 = vadd.f32 %v2093, %v2132
      %v2134 = vpop.f32.mrf.mxu0
      %v2135 = vpop.f32.mrf.mxu0
      %v2136 = vpop.f32.mrf.mxu0
      %2137 = vdwg.mxu0
      %v2138 = vadd.f32 %v1756, %v2133
      %v2139 = vld [vmem:[%s245] sm:$0x33]
      %v2140 = vld [vmem:[%s4] sm:$0xf]
      %v2141 = vld [vmem:[%s4 + $0x4] sm:$0xf]
      %v2142 = vld [vmem:[%s4 + $0x8] sm:$0xf]
      %v2143 = vld [vmem:[%s4 + $0xc] sm:$0xf]
      %v2144 = vld [vmem:[%s4 + $0x10] sm:$0xf]
      %v2145 = vld [vmem:[%s4 + $0x14] sm:$0xf]
      %v2146 = vld [vmem:[%s4 + $0x18] sm:$0xf]
      %v2147 = vld [vmem:[%s4 + $0x1c] sm:$0xf]
      %v2148 = vld [vmem:[%s4 + $0x20] sm:$0xf]
      %v2149 = vld [vmem:[%s4 + $0x24] sm:$0xf]
      %v2150 = vld [vmem:[%s4 + $0x28] sm:$0xf]
      %v2151 = vld [vmem:[%s4 + $0x2c] sm:$0xf]
      %v2152 = vld [vmem:[%s4 + $0x30] sm:$0xf]
      %v2153 = vld [vmem:[%s4 + $0x34] sm:$0xf]
      %v2154 = vld [vmem:[%s4 + $0x38] sm:$0xf]
      %v2155 = vld [vmem:[%s4 + $0x3c] sm:$0xf]
      %v2156 = vld [vmem:[%s4 + $0x40] sm:$0xf]
      %v2157 = vld [vmem:[%s4 + $0x44] sm:$0xf]
      %v2158 = vld [vmem:[%s4 + $0x48] sm:$0xf]
      %v2159 = vld [vmem:[%s4 + $0x4c] sm:$0xf]
      %v2160 = vld [vmem:[%s4 + $0x50] sm:$0xf]
      %v2161 = vld [vmem:[%s4 + $0x54] sm:$0xf]
      %v2162 = vld [vmem:[%s4 + $0x58] sm:$0xf]
      %v2163 = vld [vmem:[%s4 + $0x5c] sm:$0xf]
      %v2164 = vld [vmem:[%s4 + $0x60] sm:$0xf]
      %v2165 = vld [vmem:[%s4 + $0x64] sm:$0xf]
      %v2166 = vld [vmem:[%s4 + $0x68] sm:$0xf]
      %v2167 = vld [vmem:[%s4 + $0x6c] sm:$0xf]
      %v2168 = vld [vmem:[%s4 + $0x70] sm:$0xf]
      %v2169 = vld [vmem:[%s4 + $0x74] sm:$0xf]
      %v2170 = vld [vmem:[%s4 + $0x78] sm:$0xf]
      %v2171 = vld [vmem:[%s4 + $0x7c] sm:$0xf]
      %v2173 = vunpack.c.l.b16 %v2139
      %v2174 = vunpack.c.h.b16 %v2139
      %v2175 = vpack.c.b16 %v2173, %v2173
      %v2176 = vpack.c.b16 %v2174, %v2174
      %v2211 = vunpack.c.l.b16 %v2140
      %v2212 = vunpack.c.l.b16 %v2141
      %v2213 = vunpack.c.l.b16 %v2142
      %v2214 = vunpack.c.l.b16 %v2143
      %v2215 = vunpack.c.l.b16 %v2144
      %v2216 = vunpack.c.l.b16 %v2145
      %v2217 = vunpack.c.l.b16 %v2146
      %v2218 = vunpack.c.l.b16 %v2147
      %v2219 = vunpack.c.l.b16 %v2148
      %v2220 = vunpack.c.l.b16 %v2149
      %v2221 = vunpack.c.l.b16 %v2150
      %v2222 = vunpack.c.l.b16 %v2151
      %v2223 = vunpack.c.l.b16 %v2152
      %v2224 = vunpack.c.l.b16 %v2153
      %v2225 = vunpack.c.l.b16 %v2154
      %v2226 = vunpack.c.l.b16 %v2155
      %v2227 = vunpack.c.l.b16 %v2156
      %v2228 = vunpack.c.l.b16 %v2157
      %v2229 = vunpack.c.l.b16 %v2158
      %v2230 = vunpack.c.l.b16 %v2159
      %v2231 = vunpack.c.l.b16 %v2160
      %v2232 = vunpack.c.l.b16 %v2161
      %v2233 = vunpack.c.l.b16 %v2162
      %v2234 = vunpack.c.l.b16 %v2163
      %v2235 = vunpack.c.l.b16 %v2164
      %v2236 = vunpack.c.l.b16 %v2165
      %v2237 = vunpack.c.l.b16 %v2166
      %v2238 = vunpack.c.l.b16 %v2167
      %v2239 = vunpack.c.l.b16 %v2168
      %v2240 = vunpack.c.l.b16 %v2169
      %v2241 = vunpack.c.l.b16 %v2170
      %v2242 = vunpack.c.l.b16 %v2171
      %v2243 = vpack.c.b16 %v2212, %v2211
      %v2244 = vpack.c.b16 %v2214, %v2213
      %v2245 = vpack.c.b16 %v2216, %v2215
      %v2246 = vpack.c.b16 %v2218, %v2217
      %v2247 = vpack.c.b16 %v2220, %v2219
      %v2248 = vpack.c.b16 %v2222, %v2221
      %v2249 = vpack.c.b16 %v2224, %v2223
      %v2250 = vpack.c.b16 %v2226, %v2225
      %v2251 = vpack.c.b16 %v2228, %v2227
      %v2252 = vpack.c.b16 %v2230, %v2229
      %v2253 = vpack.c.b16 %v2232, %v2231
      %v2254 = vpack.c.b16 %v2234, %v2233
      %v2255 = vpack.c.b16 %v2236, %v2235
      %v2256 = vpack.c.b16 %v2238, %v2237
      %v2257 = vpack.c.b16 %v2240, %v2239
      %v2258 = vpack.c.b16 %v2242, %v2241
      %2275 = vmatprep.subr.bf16.mxu0 0
      %2276 = vmatpush1.bf16.msra.mxu0 %v2250
      %2277 = vmatprep.subr.bf16.mxu0 0
      %2278 = vmatpush1.bf16.msra.mxu0 %v2249
      %2279 = vmatprep.subr.bf16.mxu0 0
      %2280 = vmatpush1.bf16.msra.mxu0 %v2248
      %2281 = vmatprep.subr.bf16.mxu0 0
      %2282 = vmatpush1.bf16.msra.mxu0 %v2247
      %2283 = vmatprep.subr.bf16.mxu0 0
      %2284 = vmatpush1.bf16.msra.mxu0 %v2246
      %2285 = vmatprep.subr.bf16.mxu0 0
      %2286 = vmatpush1.bf16.msra.mxu0 %v2245
      %2287 = vmatprep.subr.bf16.mxu0 0
      %2288 = vmatpush1.bf16.msra.mxu0 %v2244
      %2289 = vmatprep.subr.bf16.mxu0 0
      %2290 = vmatpush1.bf16.msra.mxu0 %v2243
      %2291 = vmatprep.subr.bf16.mxu0 0
      %2292 = vmatpush2.bf16.msra.mxu0 %v2258
      %2293 = vmatprep.subr.bf16.mxu0 0
      %2294 = vmatpush2.bf16.msra.mxu0 %v2257
      %2295 = vmatprep.subr.bf16.mxu0 0
      %2296 = vmatpush2.bf16.msra.mxu0 %v2256
      %2297 = vmatprep.subr.bf16.mxu0 0
      %2298 = vmatpush2.bf16.msra.mxu0 %v2255
      %2299 = vmatprep.subr.bf16.mxu0 0
      %2300 = vmatpush2.bf16.msra.mxu0 %v2254
      %2301 = vmatprep.subr.bf16.mxu0 0
      %2302 = vmatpush2.bf16.msra.mxu0 %v2253
      %2303 = vmatprep.subr.bf16.mxu0 0
      %2304 = vmatpush2.bf16.msra.mxu0 %v2252
      %2305 = vmatprep.subr.bf16.mxu0 0
      %2306 = vmatpush2.bf16.msra.mxu0 %v2251
      %2307 = vmatprep.mubr.bf16.mxu0 %v2176
      %2308 = vmatmul.mubr.bf16.gmra.mxu0 %v2175
      %v2309 = vpop.f32.mrf.mxu0
      %v2310 = vadd.f32 0.0, %v2309
      %v2311 = vpop.f32.mrf.mxu0
      %v2312 = vpop.f32.mrf.mxu0
      %v2313 = vpop.f32.mrf.mxu0
      %2314 = vdwg.mxu0
      %v2315 = vadd.f32 %v2138, %v2310
      %v2316 = vld [vmem:[#allocation2] sm:$0x66]
      %v2317 = vld [vmem:[#allocation2 + $0x8] sm:$0x66]
      %s2318 = scalar_lea.vmem %s3, 256
      %v2319 = vld [vmem:[%s2318] sm:$0xf]
      %v2320 = vld [vmem:[%s2318 + $0x4] sm:$0xf]
      %v2321 = vld [vmem:[%s2318 + $0x8] sm:$0xf]
      %v2322 = vld [vmem:[%s2318 + $0xc] sm:$0xf]
      %v2323 = vld [vmem:[%s2318 + $0x10] sm:$0xf]
      %v2324 = vld [vmem:[%s2318 + $0x14] sm:$0xf]
      %v2325 = vld [vmem:[%s2318 + $0x18] sm:$0xf]
      %v2326 = vld [vmem:[%s2318 + $0x1c] sm:$0xf]
      %v2327 = vld [vmem:[%s2318 + $0x20] sm:$0xf]
      %v2328 = vld [vmem:[%s2318 + $0x24] sm:$0xf]
      %v2329 = vld [vmem:[%s2318 + $0x28] sm:$0xf]
      %v2330 = vld [vmem:[%s2318 + $0x2c] sm:$0xf]
      %v2331 = vld [vmem:[%s2318 + $0x30] sm:$0xf]
      %v2332 = vld [vmem:[%s2318 + $0x34] sm:$0xf]
      %v2333 = vld [vmem:[%s2318 + $0x38] sm:$0xf]
      %v2334 = vld [vmem:[%s2318 + $0x3c] sm:$0xf]
      %v2335 = vld [vmem:[%s2318 + $0x40] sm:$0xf]
      %v2336 = vld [vmem:[%s2318 + $0x44] sm:$0xf]
      %v2337 = vld [vmem:[%s2318 + $0x48] sm:$0xf]
      %v2338 = vld [vmem:[%s2318 + $0x4c] sm:$0xf]
      %v2339 = vld [vmem:[%s2318 + $0x50] sm:$0xf]
      %v2340 = vld [vmem:[%s2318 + $0x54] sm:$0xf]
      %v2341 = vld [vmem:[%s2318 + $0x58] sm:$0xf]
      %v2342 = vld [vmem:[%s2318 + $0x5c] sm:$0xf]
      %v2343 = vld [vmem:[%s2318 + $0x60] sm:$0xf]
      %v2344 = vld [vmem:[%s2318 + $0x64] sm:$0xf]
      %v2345 = vld [vmem:[%s2318 + $0x68] sm:$0xf]
      %v2346 = vld [vmem:[%s2318 + $0x6c] sm:$0xf]
      %v2347 = vld [vmem:[%s2318 + $0x70] sm:$0xf]
      %v2348 = vld [vmem:[%s2318 + $0x74] sm:$0xf]
      %v2349 = vld [vmem:[%s2318 + $0x78] sm:$0xf]
      %v2350 = vld [vmem:[%s2318 + $0x7c] sm:$0xf]
      %v2351 = vld [vmem:[%s2318 + $0x80] sm:$0xf]
      %v2352 = vld [vmem:[%s2318 + $0x84] sm:$0xf]
      %v2353 = vld [vmem:[%s2318 + $0x88] sm:$0xf]
      %v2354 = vld [vmem:[%s2318 + $0x8c] sm:$0xf]
      %v2355 = vld [vmem:[%s2318 + $0x90] sm:$0xf]
      %v2356 = vld [vmem:[%s2318 + $0x94] sm:$0xf]
      %v2357 = vld [vmem:[%s2318 + $0x98] sm:$0xf]
      %v2358 = vld [vmem:[%s2318 + $0x9c] sm:$0xf]
      %v2359 = vld [vmem:[%s2318 + $0xa0] sm:$0xf]
      %v2360 = vld [vmem:[%s2318 + $0xa4] sm:$0xf]
      %v2361 = vld [vmem:[%s2318 + $0xa8] sm:$0xf]
      %v2362 = vld [vmem:[%s2318 + $0xac] sm:$0xf]
      %v2363 = vld [vmem:[%s2318 + $0xb0] sm:$0xf]
      %v2364 = vld [vmem:[%s2318 + $0xb4] sm:$0xf]
      %v2365 = vld [vmem:[%s2318 + $0xb8] sm:$0xf]
      %v2366 = vld [vmem:[%s2318 + $0xbc] sm:$0xf]
      %v2367 = vld [vmem:[%s2318 + $0xc0] sm:$0xf]
      %v2368 = vld [vmem:[%s2318 + $0xc4] sm:$0xf]
      %v2369 = vld [vmem:[%s2318 + $0xc8] sm:$0xf]
      %v2370 = vld [vmem:[%s2318 + $0xcc] sm:$0xf]
      %v2371 = vld [vmem:[%s2318 + $0xd0] sm:$0xf]
      %v2372 = vld [vmem:[%s2318 + $0xd4] sm:$0xf]
      %v2373 = vld [vmem:[%s2318 + $0xd8] sm:$0xf]
      %v2374 = vld [vmem:[%s2318 + $0xdc] sm:$0xf]
      %v2375 = vld [vmem:[%s2318 + $0xe0] sm:$0xf]
      %v2376 = vld [vmem:[%s2318 + $0xe4] sm:$0xf]
      %v2377 = vld [vmem:[%s2318 + $0xe8] sm:$0xf]
      %v2378 = vld [vmem:[%s2318 + $0xec] sm:$0xf]
      %v2379 = vld [vmem:[%s2318 + $0xf0] sm:$0xf]
      %v2380 = vld [vmem:[%s2318 + $0xf4] sm:$0xf]
      %v2381 = vld [vmem:[%s2318 + $0xf8] sm:$0xf]
      %v2382 = vld [vmem:[%s2318 + $0xfc] sm:$0xf]
      %v2385 = vunpack.c.l.b16 %v2316
      %v2386 = vunpack.c.h.b16 %v2316
      %v2387 = vunpack.c.l.b16 %v2317
      %v2388 = vunpack.c.h.b16 %v2317
      %v2389 = vpack.c.b16 %v2385, %v2385
      %v2390 = vpack.c.b16 %v2386, %v2386
      %v2391 = vpack.c.b16 %v2387, %v2387
      %v2392 = vpack.c.b16 %v2388, %v2388
      %v2393 = vrot.slane %v2389, 1
      %v2394 = vrot.slane %v2390, 1
      %v2395 = vrot.slane %v2391, 1
      %v2396 = vrot.slane %v2392, 1
      %v2465 = vunpack.c.l.b16 %v2319
      %v2466 = vunpack.c.l.b16 %v2320
      %v2467 = vunpack.c.l.b16 %v2321
      %v2468 = vunpack.c.l.b16 %v2322
      %v2469 = vunpack.c.l.b16 %v2323
      %v2470 = vunpack.c.l.b16 %v2324
      %v2471 = vunpack.c.l.b16 %v2325
      %v2472 = vunpack.c.l.b16 %v2326
      %v2473 = vunpack.c.l.b16 %v2327
      %v2474 = vunpack.c.l.b16 %v2328
      %v2475 = vunpack.c.l.b16 %v2329
      %v2476 = vunpack.c.l.b16 %v2330
      %v2477 = vunpack.c.l.b16 %v2331
      %v2478 = vunpack.c.l.b16 %v2332
      %v2479 = vunpack.c.l.b16 %v2333
      %v2480 = vunpack.c.l.b16 %v2334
      %v2481 = vunpack.c.l.b16 %v2335
      %v2482 = vunpack.c.l.b16 %v2336
      %v2483 = vunpack.c.l.b16 %v2337
      %v2484 = vunpack.c.l.b16 %v2338
      %v2485 = vunpack.c.l.b16 %v2339
      %v2486 = vunpack.c.l.b16 %v2340
      %v2487 = vunpack.c.l.b16 %v2341
      %v2488 = vunpack.c.l.b16 %v2342
      %v2489 = vunpack.c.l.b16 %v2343
      %v2490 = vunpack.c.l.b16 %v2344
      %v2491 = vunpack.c.l.b16 %v2345
      %v2492 = vunpack.c.l.b16 %v2346
      %v2493 = vunpack.c.l.b16 %v2347
      %v2494 = vunpack.c.l.b16 %v2348
      %v2495 = vunpack.c.l.b16 %v2349
      %v2496 = vunpack.c.l.b16 %v2350
      %v2497 = vunpack.c.l.b16 %v2351
      %v2498 = vunpack.c.l.b16 %v2352
      %v2499 = vunpack.c.l.b16 %v2353
      %v2500 = vunpack.c.l.b16 %v2354
      %v2501 = vunpack.c.l.b16 %v2355
      %v2502 = vunpack.c.l.b16 %v2356
      %v2503 = vunpack.c.l.b16 %v2357
      %v2504 = vunpack.c.l.b16 %v2358
      %v2505 = vunpack.c.l.b16 %v2359
      %v2506 = vunpack.c.l.b16 %v2360
      %v2507 = vunpack.c.l.b16 %v2361
      %v2508 = vunpack.c.l.b16 %v2362
      %v2509 = vunpack.c.l.b16 %v2363
      %v2510 = vunpack.c.l.b16 %v2364
      %v2511 = vunpack.c.l.b16 %v2365
      %v2512 = vunpack.c.l.b16 %v2366
      %v2513 = vunpack.c.l.b16 %v2367
      %v2514 = vunpack.c.l.b16 %v2368
      %v2515 = vunpack.c.l.b16 %v2369
      %v2516 = vunpack.c.l.b16 %v2370
      %v2517 = vunpack.c.l.b16 %v2371
      %v2518 = vunpack.c.l.b16 %v2372
      %v2519 = vunpack.c.l.b16 %v2373
      %v2520 = vunpack.c.l.b16 %v2374
      %v2521 = vunpack.c.l.b16 %v2375
      %v2522 = vunpack.c.l.b16 %v2376
      %v2523 = vunpack.c.l.b16 %v2377
      %v2524 = vunpack.c.l.b16 %v2378
      %v2525 = vunpack.c.l.b16 %v2379
      %v2526 = vunpack.c.l.b16 %v2380
      %v2527 = vunpack.c.l.b16 %v2381
      %v2528 = vunpack.c.l.b16 %v2382
      %v2529 = vpack.c.b16 %v2466, %v2465
      %v2530 = vpack.c.b16 %v2468, %v2467
      %v2531 = vpack.c.b16 %v2470, %v2469
      %v2532 = vpack.c.b16 %v2472, %v2471
      %v2533 = vpack.c.b16 %v2474, %v2473
      %v2534 = vpack.c.b16 %v2476, %v2475
      %v2535 = vpack.c.b16 %v2478, %v2477
      %v2536 = vpack.c.b16 %v2480, %v2479
      %v2537 = vpack.c.b16 %v2482, %v2481
      %v2538 = vpack.c.b16 %v2484, %v2483
      %v2539 = vpack.c.b16 %v2486, %v2485
      %v2540 = vpack.c.b16 %v2488, %v2487
      %v2541 = vpack.c.b16 %v2490, %v2489
      %v2542 = vpack.c.b16 %v2492, %v2491
      %v2543 = vpack.c.b16 %v2494, %v2493
      %v2544 = vpack.c.b16 %v2496, %v2495
      %v2545 = vpack.c.b16 %v2498, %v2497
      %v2546 = vpack.c.b16 %v2500, %v2499
      %v2547 = vpack.c.b16 %v2502, %v2501
      %v2548 = vpack.c.b16 %v2504, %v2503
      %v2549 = vpack.c.b16 %v2506, %v2505
      %v2550 = vpack.c.b16 %v2508, %v2507
      %v2551 = vpack.c.b16 %v2510, %v2509
      %v2552 = vpack.c.b16 %v2512, %v2511
      %v2553 = vpack.c.b16 %v2514, %v2513
      %v2554 = vpack.c.b16 %v2516, %v2515
      %v2555 = vpack.c.b16 %v2518, %v2517
      %v2556 = vpack.c.b16 %v2520, %v2519
      %v2557 = vpack.c.b16 %v2522, %v2521
      %v2558 = vpack.c.b16 %v2524, %v2523
      %v2559 = vpack.c.b16 %v2526, %v2525
      %v2560 = vpack.c.b16 %v2528, %v2527
      %2593 = vmatprep.subr.bf16.mxu0 0
      %2594 = vmatpush1.bf16.msra.mxu0 %v2536
      %2595 = vmatprep.subr.bf16.mxu0 0
      %2596 = vmatpush1.bf16.msra.mxu0 %v2535
      %2597 = vmatprep.subr.bf16.mxu0 0
      %2598 = vmatpush1.bf16.msra.mxu0 %v2534
      %2599 = vmatprep.subr.bf16.mxu0 0
      %2600 = vmatpush1.bf16.msra.mxu0 %v2533
      %2601 = vmatprep.subr.bf16.mxu0 0
      %2602 = vmatpush1.bf16.msra.mxu0 %v2532
      %2603 = vmatprep.subr.bf16.mxu0 0
      %2604 = vmatpush1.bf16.msra.mxu0 %v2531
      %2605 = vmatprep.subr.bf16.mxu0 0
      %2606 = vmatpush1.bf16.msra.mxu0 %v2530
      %2607 = vmatprep.subr.bf16.mxu0 0
      %2608 = vmatpush1.bf16.msra.mxu0 %v2529
      %2609 = vmatprep.subr.bf16.mxu0 0
      %2610 = vmatpush2.bf16.msra.mxu0 %v2544
      %2611 = vmatprep.subr.bf16.mxu0 0
      %2612 = vmatpush2.bf16.msra.mxu0 %v2543
      %2613 = vmatprep.subr.bf16.mxu0 0
      %2614 = vmatpush2.bf16.msra.mxu0 %v2542
      %2615 = vmatprep.subr.bf16.mxu0 0
      %2616 = vmatpush2.bf16.msra.mxu0 %v2541
      %2617 = vmatprep.subr.bf16.mxu0 0
      %2618 = vmatpush2.bf16.msra.mxu0 %v2540
      %2619 = vmatprep.subr.bf16.mxu0 0
      %2620 = vmatpush2.bf16.msra.mxu0 %v2539
      %2621 = vmatprep.subr.bf16.mxu0 0
      %2622 = vmatpush2.bf16.msra.mxu0 %v2538
      %2623 = vmatprep.subr.bf16.mxu0 0
      %2624 = vmatpush2.bf16.msra.mxu0 %v2537
      %2625 = vmatprep.mubr.bf16.mxu0 %v2394
      %2626 = vmatmul.mubr.bf16.gmra.mxu0 %v2393
      %v2627 = vpop.f32.mrf.mxu0
      %v2628 = vadd.f32 0.0, %v2627
      %v2629 = vpop.f32.mrf.mxu0
      %v2630 = vpop.f32.mrf.mxu0
      %v2631 = vpop.f32.mrf.mxu0
      %2632 = vdwg.mxu0
      %2633 = vmatprep.subr.bf16.mxu0 0
      %2634 = vmatpush1.bf16.msra.mxu0 %v2552
      %2635 = vmatprep.subr.bf16.mxu0 0
      %2636 = vmatpush1.bf16.msra.mxu0 %v2551
      %2637 = vmatprep.subr.bf16.mxu0 0
      %2638 = vmatpush1.bf16.msra.mxu0 %v2550
      %2639 = vmatprep.subr.bf16.mxu0 0
      %2640 = vmatpush1.bf16.msra.mxu0 %v2549
      %2641 = vmatprep.subr.bf16.mxu0 0
      %2642 = vmatpush1.bf16.msra.mxu0 %v2548
      %2643 = vmatprep.subr.bf16.mxu0 0
      %2644 = vmatpush1.bf16.msra.mxu0 %v2547
      %2645 = vmatprep.subr.bf16.mxu0 0
      %2646 = vmatpush1.bf16.msra.mxu0 %v2546
      %2647 = vmatprep.subr.bf16.mxu0 0
      %2648 = vmatpush1.bf16.msra.mxu0 %v2545
      %2649 = vmatprep.subr.bf16.mxu0 0
      %2650 = vmatpush2.bf16.msra.mxu0 %v2560
      %2651 = vmatprep.subr.bf16.mxu0 0
      %2652 = vmatpush2.bf16.msra.mxu0 %v2559
      %2653 = vmatprep.subr.bf16.mxu0 0
      %2654 = vmatpush2.bf16.msra.mxu0 %v2558
      %2655 = vmatprep.subr.bf16.mxu0 0
      %2656 = vmatpush2.bf16.msra.mxu0 %v2557
      %2657 = vmatprep.subr.bf16.mxu0 0
      %2658 = vmatpush2.bf16.msra.mxu0 %v2556
      %2659 = vmatprep.subr.bf16.mxu0 0
      %2660 = vmatpush2.bf16.msra.mxu0 %v2555
      %2661 = vmatprep.subr.bf16.mxu0 0
      %2662 = vmatpush2.bf16.msra.mxu0 %v2554
      %2663 = vmatprep.subr.bf16.mxu0 0
      %2664 = vmatpush2.bf16.msra.mxu0 %v2553
      %2665 = vmatprep.mubr.bf16.mxu0 %v2396
      %2666 = vmatmul.mubr.bf16.gmra.mxu0 %v2395
      %v2667 = vpop.f32.mrf.mxu0
      %v2668 = vadd.f32 %v2628, %v2667
      %v2669 = vpop.f32.mrf.mxu0
      %v2670 = vpop.f32.mrf.mxu0
      %v2671 = vpop.f32.mrf.mxu0
      %2672 = vdwg.mxu0
      %v2673 = vadd.f32 %v2315, %v2668
      %v2674 = vld [vmem:[%s245] sm:$0x77]
      %s2675 = scalar_lea.vmem %s4, 128
      %v2676 = vld [vmem:[%s2675] sm:$0xf]
      %v2677 = vld [vmem:[%s2675 + $0x4] sm:$0xf]
      %v2678 = vld [vmem:[%s2675 + $0x8] sm:$0xf]
      %v2679 = vld [vmem:[%s2675 + $0xc] sm:$0xf]
      %v2680 = vld [vmem:[%s2675 + $0x10] sm:$0xf]
      %v2681 = vld [vmem:[%s2675 + $0x14] sm:$0xf]
      %v2682 = vld [vmem:[%s2675 + $0x18] sm:$0xf]
      %v2683 = vld [vmem:[%s2675 + $0x1c] sm:$0xf]
      %v2684 = vld [vmem:[%s2675 + $0x20] sm:$0xf]
      %v2685 = vld [vmem:[%s2675 + $0x24] sm:$0xf]
      %v2686 = vld [vmem:[%s2675 + $0x28] sm:$0xf]
      %v2687 = vld [vmem:[%s2675 + $0x2c] sm:$0xf]
      %v2688 = vld [vmem:[%s2675 + $0x30] sm:$0xf]
      %v2689 = vld [vmem:[%s2675 + $0x34] sm:$0xf]
      %v2690 = vld [vmem:[%s2675 + $0x38] sm:$0xf]
      %v2691 = vld [vmem:[%s2675 + $0x3c] sm:$0xf]
      %v2692 = vld [vmem:[%s2675 + $0x40] sm:$0xf]
      %v2693 = vld [vmem:[%s2675 + $0x44] sm:$0xf]
      %v2694 = vld [vmem:[%s2675 + $0x48] sm:$0xf]
      %v2695 = vld [vmem:[%s2675 + $0x4c] sm:$0xf]
      %v2696 = vld [vmem:[%s2675 + $0x50] sm:$0xf]
      %v2697 = vld [vmem:[%s2675 + $0x54] sm:$0xf]
      %v2698 = vld [vmem:[%s2675 + $0x58] sm:$0xf]
      %v2699 = vld [vmem:[%s2675 + $0x5c] sm:$0xf]
      %v2700 = vld [vmem:[%s2675 + $0x60] sm:$0xf]
      %v2701 = vld [vmem:[%s2675 + $0x64] sm:$0xf]
      %v2702 = vld [vmem:[%s2675 + $0x68] sm:$0xf]
      %v2703 = vld [vmem:[%s2675 + $0x6c] sm:$0xf]
      %v2704 = vld [vmem:[%s2675 + $0x70] sm:$0xf]
      %v2705 = vld [vmem:[%s2675 + $0x74] sm:$0xf]
      %v2706 = vld [vmem:[%s2675 + $0x78] sm:$0xf]
      %v2707 = vld [vmem:[%s2675 + $0x7c] sm:$0xf]
      %v2709 = vunpack.c.l.b16 %v2674
      %v2710 = vunpack.c.h.b16 %v2674
      %v2711 = vpack.c.b16 %v2709, %v2709
      %v2712 = vpack.c.b16 %v2710, %v2710
      %v2714 = vshrl.u32 %v2711, 16
      %v2716 = vshll.u32 %v2711, 16
      %v2718 = vrot.slane %v2716, 1
      %v2719 = vor.u32 %v2714, %v2718
      %v2721 = vshrl.u32 %v2712, 16
      %v2723 = vshll.u32 %v2712, 16
      %v2725 = vrot.slane %v2723, 1
      %v2726 = vor.u32 %v2721, %v2725
      %v2761 = vunpack.c.l.b16 %v2676
      %v2762 = vunpack.c.l.b16 %v2677
      %v2763 = vunpack.c.l.b16 %v2678
      %v2764 = vunpack.c.l.b16 %v2679
      %v2765 = vunpack.c.l.b16 %v2680
      %v2766 = vunpack.c.l.b16 %v2681
      %v2767 = vunpack.c.l.b16 %v2682
      %v2768 = vunpack.c.l.b16 %v2683
      %v2769 = vunpack.c.l.b16 %v2684
      %v2770 = vunpack.c.l.b16 %v2685
      %v2771 = vunpack.c.l.b16 %v2686
      %v2772 = vunpack.c.l.b16 %v2687
      %v2773 = vunpack.c.l.b16 %v2688
      %v2774 = vunpack.c.l.b16 %v2689
      %v2775 = vunpack.c.l.b16 %v2690
      %v2776 = vunpack.c.l.b16 %v2691
      %v2777 = vunpack.c.l.b16 %v2692
      %v2778 = vunpack.c.l.b16 %v2693
      %v2779 = vunpack.c.l.b16 %v2694
      %v2780 = vunpack.c.l.b16 %v2695
      %v2781 = vunpack.c.l.b16 %v2696
      %v2782 = vunpack.c.l.b16 %v2697
      %v2783 = vunpack.c.l.b16 %v2698
      %v2784 = vunpack.c.l.b16 %v2699
      %v2785 = vunpack.c.l.b16 %v2700
      %v2786 = vunpack.c.l.b16 %v2701
      %v2787 = vunpack.c.l.b16 %v2702
      %v2788 = vunpack.c.l.b16 %v2703
      %v2789 = vunpack.c.l.b16 %v2704
      %v2790 = vunpack.c.l.b16 %v2705
      %v2791 = vunpack.c.l.b16 %v2706
      %v2792 = vunpack.c.l.b16 %v2707
      %v2793 = vpack.c.b16 %v2762, %v2761
      %v2794 = vpack.c.b16 %v2764, %v2763
      %v2795 = vpack.c.b16 %v2766, %v2765
      %v2796 = vpack.c.b16 %v2768, %v2767
      %v2797 = vpack.c.b16 %v2770, %v2769
      %v2798 = vpack.c.b16 %v2772, %v2771
      %v2799 = vpack.c.b16 %v2774, %v2773
      %v2800 = vpack.c.b16 %v2776, %v2775
      %v2801 = vpack.c.b16 %v2778, %v2777
      %v2802 = vpack.c.b16 %v2780, %v2779
      %v2803 = vpack.c.b16 %v2782, %v2781
      %v2804 = vpack.c.b16 %v2784, %v2783
      %v2805 = vpack.c.b16 %v2786, %v2785
      %v2806 = vpack.c.b16 %v2788, %v2787
      %v2807 = vpack.c.b16 %v2790, %v2789
      %v2808 = vpack.c.b16 %v2792, %v2791
      %2825 = vmatprep.subr.bf16.mxu0 0
      %2826 = vmatpush1.bf16.msra.mxu0 %v2800
      %2827 = vmatprep.subr.bf16.mxu0 0
      %2828 = vmatpush1.bf16.msra.mxu0 %v2799
      %2829 = vmatprep.subr.bf16.mxu0 0
      %2830 = vmatpush1.bf16.msra.mxu0 %v2798
      %2831 = vmatprep.subr.bf16.mxu0 0
      %2832 = vmatpush1.bf16.msra.mxu0 %v2797
      %2833 = vmatprep.subr.bf16.mxu0 0
      %2834 = vmatpush1.bf16.msra.mxu0 %v2796
      %2835 = vmatprep.subr.bf16.mxu0 0
      %2836 = vmatpush1.bf16.msra.mxu0 %v2795
      %2837 = vmatprep.subr.bf16.mxu0 0
      %2838 = vmatpush1.bf16.msra.mxu0 %v2794
      %2839 = vmatprep.subr.bf16.mxu0 0
      %2840 = vmatpush1.bf16.msra.mxu0 %v2793
      %2841 = vmatprep.subr.bf16.mxu0 0
      %2842 = vmatpush2.bf16.msra.mxu0 %v2808
      %2843 = vmatprep.subr.bf16.mxu0 0
      %2844 = vmatpush2.bf16.msra.mxu0 %v2807
      %2845 = vmatprep.subr.bf16.mxu0 0
      %2846 = vmatpush2.bf16.msra.mxu0 %v2806
      %2847 = vmatprep.subr.bf16.mxu0 0
      %2848 = vmatpush2.bf16.msra.mxu0 %v2805
      %2849 = vmatprep.subr.bf16.mxu0 0
      %2850 = vmatpush2.bf16.msra.mxu0 %v2804
      %2851 = vmatprep.subr.bf16.mxu0 0
      %2852 = vmatpush2.bf16.msra.mxu0 %v2803
      %2853 = vmatprep.subr.bf16.mxu0 0
      %2854 = vmatpush2.bf16.msra.mxu0 %v2802
      %2855 = vmatprep.subr.bf16.mxu0 0
      %2856 = vmatpush2.bf16.msra.mxu0 %v2801
      %2857 = vmatprep.mubr.bf16.mxu0 %v2726
      %2858 = vmatmul.mubr.bf16.gmra.mxu0 %v2719
      %v2859 = vpop.f32.mrf.mxu0
      %v2860 = vadd.f32 0.0, %v2859
      %v2861 = vpop.f32.mrf.mxu0
      %v2862 = vpop.f32.mrf.mxu0
      %v2863 = vpop.f32.mrf.mxu0
      %2864 = vdwg.mxu0
      %v2865 = vadd.f32 %v2673, %v2860
      %v2866 = vmax.f32 %v2865, 0.0
      %2867 = vst [vmem:[%s249] sm:$0xf] %v2866
      %p2868 = scmp.lt.s32.totalorder %s17, 1
      %s2869 = scalar_select %p2868, %s17, 1
      %s2870 = smul.addr %s2869, 4
      %s2871 = scalar_lea.vmem %s6, %s2870
      // Predicated region
      $region45: #{down_connection_pallas.1} parent=43 // pred_check
        %p2872 = pneg %p166
      $region46: #{down_connection_pallas.1} parent=43 // pred_check_branch
        %2874 = sbr.rel (%p2872) target = $region48
      $region47: #{down_connection_pallas.1} parent=43 // pred_region
        _
      $region48: #{down_connection_pallas.1} parent=43 // pred_fallthru
        _
    $region44: #{down_connection_pallas.1} parent=5 // pred_fallthru
      _
    %p2875 = scmp.le.s32.totalorder 2, %s12
    // Predicated region
    $region49: #{down_connection_pallas.1} parent=5 // pred_check
      %p2876 = pneg %p2875
    $region50: #{down_connection_pallas.1} parent=5 // pred_check_branch
      %2878 = sbr.rel (%p2876) target = $region52
    $region51: #{down_connection_pallas.1} parent=5 // pred_region
      %s2879 = ssub.s32 %s12, 2
      // Predicated region
      $region53: #{down_connection_pallas.1} parent=51 // pred_check
        %p2880 = pneg %p172
      $region54: #{down_connection_pallas.1} parent=51 // pred_check_branch
        %2882 = sbr.rel (%p2880) target = $region56
      $region55: #{down_connection_pallas.1} parent=51 // pred_region
        %p2883 = scmp.lt.s32.totalorder %s18, 1
        %s2884 = scalar_select %p2883, %s18, 1
        %s2885 = smul.addr %s2884, 4
        %s2886 = scalar_lea.vmem %s6, %s2885
      $region56: #{down_connection_pallas.1} parent=51 // pred_fallthru
        _
    $region52: #{down_connection_pallas.1} parent=5 // pred_fallthru
      _
  $region6: #{down_connection_pallas.1} parent=0 // loop_footer
    %s16 = sadd.s32 1, %s12
  $region7: #{down_connection_pallas.1} parent=0 // loop_footer_branch
    %11 = sbr.rel target = $region3
  $region8: #{down_connection_pallas.1} parent=0 // loop_exit
    _

</llo_original>
